<compile_context>
chip_gen: v6e
topology: v6e:2x2x1
jax: 0.10.0
libtpu: 0.0.40
codegen_flags: <defaults>
</compile_context>

<pallas_src>
import math
from functools import partial

import jax
import jax.numpy as jnp
from jax import lax
from jax.experimental import pallas as pl
from jax.experimental.pallas import tpu as pltpu

LANE = 128
SUB = 8


def _round_up(v, m):
    return (v + m - 1) // m * m


# ---------------------------------------------------------------------------
# Fused kernel: conv-as-matmul + bias + ReLU + 2x2 max-pool + flatten + MLP.
# ---------------------------------------------------------------------------
def _fused_cnn_kernel(patches_ref, wc_ref, bc_ref, w1_ref, b1_ref,
                      w2_ref, b2_ref, w3_ref, b3_ref, out_ref, flat_ref):
    tb = out_ref.shape[0]            # samples in this batch tile
    oc = wc_ref.shape[1]             # conv output channels
    feat = flat_ref.shape[1]         # flattened feature width = pp * oc
    pp = feat // oc                  # pooled positions per sample
    nt = pp * tb                     # rows per pool-offset slab

    # Convolution as ONE im2col matmul.  patches rows are ordered
    # (pool_offset j, pooled position p, sample b); taps ordered (kh, kw).
    conv = jnp.dot(patches_ref[0], wc_ref[...],
                   preferred_element_type=jnp.float32)          # (4*nt, oc)

    # 2x2 max-pool == max over the 4 contiguous pool-offset slabs.  Bias-add
    # and ReLU commute with the max, so apply them once afterwards.
    pooled = jnp.maximum(jnp.maximum(conv[0:nt], conv[nt:2 * nt]),
                         jnp.maximum(conv[2 * nt:3 * nt], conv[3 * nt:4 * nt]))
    pooled = jnp.maximum(pooled + bc_ref[...], 0.0)              # (nt, oc), rows (p, b)

    # Flatten (p, b, oc) -> (b, p*oc) with static lane-offset stores into a
    # VMEM scratch (no in-kernel reshape/transpose).  Every lane is rewritten
    # each grid step, so the persistent scratch carries no stale data.
    for p in range(pp):
        flat_ref[:, p * oc:(p + 1) * oc] = pooled[p * tb:(p + 1) * tb, :]

    # Fused MLP head: Linear -> ReLU -> Linear -> ReLU -> Linear.
    flat = flat_ref[...].astype(jnp.bfloat16)
    h = jnp.dot(flat, w1_ref[...], preferred_element_type=jnp.float32)
    h = jnp.maximum(h + b1_ref[...], 0.0)
    h = jnp.dot(h.astype(jnp.bfloat16), w2_ref[...],
                preferred_element_type=jnp.float32)
    h = jnp.maximum(h + b2_ref[...], 0.0)
    out = jnp.dot(h, w3_ref[...], preferred_element_type=jnp.float32)
    out_ref[...] = out + b3_ref[...]


# ---------------------------------------------------------------------------
# Wrapper-side layout plumbing (per-call data movement only; all constant
# weight transforms live in prepare_params).
# ---------------------------------------------------------------------------
def _pick_batch_tile(batch, pp, k2):
    """Batch tile: multiple of 8, capped by a per-buffer VMEM budget (v7x-safe)."""
    per_sample = 4 * pp * k2 * 2                 # bf16 patch bytes per sample
    budget = 2 * 1024 * 1024                     # per patches buffer (x2 for double-buffer)
    tb = max(1, budget // max(per_sample, 1))
    tb = max(SUB, (min(tb, 128) // SUB) * SUB)
    return min(tb, _round_up(batch, SUB))


def _build_patches(x_hw, k, ph, pw, tb):
    """x_hw: (Bp, H, W) -> (n_tiles, 4*PH*PW*tb, k*k) bf16.

    Per tile, rows are ordered (pool_offset j = py*2+px, position p = ph*PW+pw,
    sample b); taps ordered (kh, kw) to match conv_w.reshape(OC, k*k).
    """
    bp = x_hw.shape[0]
    nt = bp // tb
    slabs = []
    for py in range(2):
        for px in range(2):
            taps = []
            for kh in range(k):
                for kw in range(k):
                    r0, c0 = py + kh, px + kw
                    taps.append(lax.slice(
                        x_hw,
                        (0, r0, c0),
                        (bp, r0 + 2 * (ph - 1) + 1, c0 + 2 * (pw - 1) + 1),
                        (1, 2, 2)))                      # (Bp, PH, PW)
            slabs.append(jnp.stack(taps, axis=-1))        # (Bp, PH, PW, k*k)
    pat = jnp.stack(slabs, axis=0)                        # (4, Bp, PH, PW, k*k)
    pat = pat.reshape(4, nt, tb, ph * pw, k * k)          # (j, t, b, p, tap)
    pat = pat.transpose(1, 0, 3, 2, 4)                    # (t, j, p, b, tap)
    return pat.reshape(nt, 4 * ph * pw * tb, k * k).astype(jnp.bfloat16)


def prepare_params(params):
    """One-time weight layout/dtype prep (hoisted out of the per-call forward)."""
    conv_w = jnp.asarray(params["conv_w"], jnp.float32)
    oc, _, k, _ = conv_w.shape
    wc = conv_w.reshape(oc, k * k).T.astype(jnp.bfloat16)         # (k*k, OC)
    bc = jnp.asarray(params["conv_b"], jnp.float32).reshape(1, oc)

    w1 = jnp.asarray(params["w1"], jnp.float32)                   # (latent, 256)
    latent, d1 = w1.shape
    pp = latent // oc
    # Fold PyTorch's channel-first flatten (oc, p) into W1's row order (p, oc).
    w1k = (w1.reshape(oc, pp, d1).transpose(1, 0, 2)
             .reshape(latent, d1).astype(jnp.bfloat16))
    b1 = jnp.asarray(params["b1"], jnp.float32).reshape(1, d1)

    w2 = jnp.asarray(params["w2"], jnp.float32).astype(jnp.bfloat16)
    b2 = jnp.asarray(params["b2"], jnp.float32).reshape(1, -1)

    w3 = jnp.asarray(params["w3"], jnp.float32)
    d2, d3 = w3.shape
    d3p = _round_up(d3, LANE)                                     # lane-dense output
    w3p = jnp.pad(w3, ((0, 0), (0, d3p - d3)))
    b3p = jnp.pad(jnp.asarray(params["b3"], jnp.float32).reshape(1, d3),
                  ((0, 0), (0, d3p - d3)))

    return {"wc": wc, "bc": bc, "w1": w1k, "b1": b1,
            "w2": w2, "b2": b2, "w3": w3p, "b3": b3p}


@partial(jax.jit, static_argnames=("num_outputs",))
def simple_cnn_forward(x, prep, *, num_outputs=6):
    """Forward pass matching SimpleCNN.forward (eval mode)."""
    wc, bc = prep["wc"], prep["bc"]
    w1k, b1 = prep["w1"], prep["b1"]
    w2, b2 = prep["w2"], prep["b2"]
    w3p, b3p = prep["w3"], prep["b3"]

    batch = x.shape[0]
    h_img, w_img = x.shape[2], x.shape[3]
    k2, oc = wc.shape
    k = int(round(math.sqrt(k2)))
    oh, ow = h_img - k + 1, w_img - k + 1
    ph, pw = oh // 2, ow // 2
    pp = ph * pw
    feat = pp * oc
    assert feat == w1k.shape[0], "latent dim does not match input geometry"

    # TODO(synk): nn.Dropout(p=0.2) is identity in eval/inference mode;
    # training-mode dropout (pltpu.prng_random_bits mask) not implemented.

    tb = _pick_batch_tile(batch, pp, k2)
    bp = _round_up(batch, tb)
    x_hw = x[:, 0, :, :]
    if bp != batch:
        x_hw = jnp.pad(x_hw, ((0, bp - batch), (0, 0), (0, 0)))

    # TODO(synk): in-kernel im2col from the raw (tb, H, W) image would cut the
    # conv HBM read further; it needs lane-strided slicing so it is left to XLA.
    patches = _build_patches(x_hw, k, ph, pw, tb)     # (n_tiles, 4*pp*tb, k2) bf16
    n_tiles = bp // tb
    rows = 4 * pp * tb

    d1, d2, d3p = w1k.shape[1], w2.shape[1], w3p.shape[1]
    flops = 2 * bp * (4 * pp * k2 * oc + feat * d1 + d1 * d2 + d2 * d3p)
    bytes_accessed = (patches.size * 2
                      + (wc.size + w1k.size + w2.size) * 2
                      + (bc.size + b1.size + b2.size + w3p.size + b3p.size) * 4
                      + bp * d3p * 4)

    out = pl.pallas_call(
        _fused_cnn_kernel,
        out_shape=jax.ShapeDtypeStruct((bp, d3p), jnp.float32),
        grid=(n_tiles,),
        in_specs=[
            pl.BlockSpec((1, rows, k2), lambda t: (t, 0, 0)),   # patches (per tile)
            pl.BlockSpec((k2, oc), lambda t: (0, 0)),           # conv weight (resident)
            pl.BlockSpec((1, oc), lambda t: (0, 0)),            # conv bias
            pl.BlockSpec((feat, d1), lambda t: (0, 0)),         # W1 (bf16, resident)
            pl.BlockSpec((1, d1), lambda t: (0, 0)),            # b1
            pl.BlockSpec((d1, d2), lambda t: (0, 0)),           # W2 (bf16, resident)
            pl.BlockSpec((1, d2), lambda t: (0, 0)),            # b2
            pl.BlockSpec((d2, d3p), lambda t: (0, 0)),          # W3 (128-lane padded)
            pl.BlockSpec((1, d3p), lambda t: (0, 0)),           # b3 (padded)
        ],
        out_specs=pl.BlockSpec((tb, d3p), lambda t: (t, 0)),
        scratch_shapes=[pltpu.VMEM((tb, feat), jnp.float32)],   # flattened activations
        compiler_params=pltpu.CompilerParams(
            dimension_semantics=("parallel",)),
        cost_estimate=pl.CostEstimate(flops=flops, transcendentals=0,
                                      bytes_accessed=bytes_accessed),
    )(patches, wc, bc, w1k, b1, w2, b2, w3p, b3p)

    return out[:batch, :num_outputs]


# ---------------------------------------------------------------------------
# Parameters (PyTorch-style shapes/init, linear weights stored (in, out)).
# ---------------------------------------------------------------------------
def init_params(key, *, in_hw=(16, 16), num_filter=32, kernel_size=5,
                d1=256, d2=128, d3=6):
    H, W = in_hw
    OH, OW = H - kernel_size + 1, W - kernel_size + 1
    PH, PW = OH // 2, OW // 2
    latent = num_filter * PH * PW
    ks = jax.random.split(key, 8)

    def u(k, shape, fan_in):
        bound = 1.0 / jnp.sqrt(jnp.float32(fan_in))
        return jax.random.uniform(k, shape, jnp.float32, -bound, bound)

    kk = kernel_size * kernel_size
    return {
        "conv_w": u(ks[0], (num_filter, 1, kernel_size, kernel_size), kk),
        "conv_b": u(ks[1], (num_filter,), kk),
        "w1": u(ks[2], (latent, d1), latent),     # (in, out)
        "b1": u(ks[3], (d1,), latent),
        "w2": u(ks[4], (d1, d2), d1),
        "b2": u(ks[5], (d2,), d1),
        "w3": u(ks[6], (d2, d3), d2),
        "b3": u(ks[7], (d3,), d2),
    }


def simple_cnn_ref(x, params):
    """Pure-JAX f32 reference mirroring the PyTorch forward (eval mode)."""
    y = lax.conv_general_dilated(
        x, params["conv_w"], window_strides=(1, 1), padding="VALID",
        dimension_numbers=("NCHW", "OIHW", "NCHW"))
    y = y + params["conv_b"][None, :, None, None]
    y = jnp.maximum(y, 0.0)
    y = lax.reduce_window(y, -jnp.inf, lax.max,
                          (1, 1, 2, 2), (1, 1, 2, 2), "VALID")
    f = y.reshape(y.shape[0], -1)                       # channel-first flatten
    h = jnp.maximum(f @ params["w1"] + params["b1"], 0.0)
    h = jnp.maximum(h @ params["w2"] + params["b2"], 0.0)
    return h @ params["w3"] + params["b3"]


if __name__ == "__main__":
    B, H, W = 2, 16, 16            # small test input: (B, 1, 16, 16)
    key = jax.random.PRNGKey(0)
    kx, kp = jax.random.split(key)

    x = jax.random.normal(kx, (B, 1, H, W), jnp.float32)
    params = init_params(kp, in_hw=(H, W), num_filter=32, kernel_size=5)

    prep = prepare_params(params)                   # one-time layout/dtype prep
    out = simple_cnn_forward(x, prep, num_outputs=params["w3"].shape[1])
    out = jax.block_until_ready(out)
    assert out.shape == (B, 6), out.shape

    ref = simple_cnn_ref(x, params)
    max_err = float(jnp.max(jnp.abs(out - ref)))
    # bf16 weight/activation streaming -> slightly looser tolerance than f32.
    assert jnp.allclose(out, ref, rtol=5e-2, atol=1e-2), max_err

    print("KERNEL_OK")
</pallas_src>

<mosaic_0001>
module attributes {stable_mosaic.version = 11 : i64} {
  func.func @_fused_cnn_kernel(%arg0: i32, %arg1: memref<1x1152x25xbf16, #tpu.memory_space<vmem>>, %arg2: memref<25x32xbf16, #tpu.memory_space<vmem>>, %arg3: memref<1x32xf32, #tpu.memory_space<vmem>>, %arg4: memref<1152x256xbf16, #tpu.memory_space<vmem>>, %arg5: memref<1x256xf32, #tpu.memory_space<vmem>>, %arg6: memref<256x128xbf16, #tpu.memory_space<vmem>>, %arg7: memref<1x128xf32, #tpu.memory_space<vmem>>, %arg8: memref<128x128xf32, #tpu.memory_space<vmem>>, %arg9: memref<1x128xf32, #tpu.memory_space<vmem>>, %arg10: memref<8x128xf32, #tpu.memory_space<vmem>>, %arg11: memref<8x1152xf32, #tpu.memory_space<vmem>>) attributes {dimension_semantics = [#tpu.dimension_semantics<parallel>], iteration_bounds = array<i64: 1>, scalar_prefetch = 0 : i64, scratch_operands = 1 : i64, tpu.core_type = #tpu.core_type<tc>, window_params = [{transform_indices = @transform_0, window_bounds = array<i64: 1, 1152, 25>}, {pipeline_mode = #tpu.pipeline_mode<synchronous>, transform_indices = @transform_1, window_bounds = array<i64: 25, 32>}, {pipeline_mode = #tpu.pipeline_mode<synchronous>, transform_indices = @transform_2, window_bounds = array<i64: 1, 32>}, {pipeline_mode = #tpu.pipeline_mode<synchronous>, transform_indices = @transform_3, window_bounds = array<i64: 1152, 256>}, {pipeline_mode = #tpu.pipeline_mode<synchronous>, transform_indices = @transform_4, window_bounds = array<i64: 1, 256>}, {pipeline_mode = #tpu.pipeline_mode<synchronous>, transform_indices = @transform_5, window_bounds = array<i64: 256, 128>}, {pipeline_mode = #tpu.pipeline_mode<synchronous>, transform_indices = @transform_6, window_bounds = array<i64: 1, 128>}, {pipeline_mode = #tpu.pipeline_mode<synchronous>, transform_indices = @transform_7, window_bounds = array<i64: 128, 128>}, {pipeline_mode = #tpu.pipeline_mode<synchronous>, transform_indices = @transform_8, window_bounds = array<i64: 1, 128>}, {transform_indices = @transform_9, window_bounds = array<i64: 8, 128>}]} {
    %c0 = arith.constant 0 : index
    %c0_0 = arith.constant 0 : index
    %c0_1 = arith.constant 0 : index
    %0 = vector.load %arg1[%c0, %c0_0, %c0_1] : memref<1x1152x25xbf16, #tpu.memory_space<vmem>>, vector<1x1152x25xbf16>
    %1 = vector.shape_cast %0 : vector<1x1152x25xbf16> to vector<1152x25xbf16>
    %c0_2 = arith.constant 0 : index
    %c0_3 = arith.constant 0 : index
    %2 = vector.load %arg2[%c0_2, %c0_3] : memref<25x32xbf16, #tpu.memory_space<vmem>>, vector<25x32xbf16>
    %cst = arith.constant dense<0.000000e+00> : vector<1152x32xf32>
    %3 = tpu.matmul %1, %2, %cst {dimension_numbers = #tpu.dot_dimension_numbers<[1], [0], [0], [1], [0, 0, 1, 1], [], []>} : vector<1152x25xbf16>, vector<25x32xbf16>, vector<1152x32xf32> -> vector<1152x32xf32>
    %4 = vector.extract_strided_slice %3 {offsets = [0, 0], sizes = [288, 32], strides = [1, 1]} : vector<1152x32xf32> to vector<288x32xf32>
    %5 = vector.extract_strided_slice %3 {offsets = [288, 0], sizes = [288, 32], strides = [1, 1]} : vector<1152x32xf32> to vector<288x32xf32>
    %6 = arith.maximumf %4, %5 : vector<288x32xf32>
    %7 = vector.extract_strided_slice %3 {offsets = [576, 0], sizes = [288, 32], strides = [1, 1]} : vector<1152x32xf32> to vector<288x32xf32>
    %8 = vector.extract_strided_slice %3 {offsets = [864, 0], sizes = [288, 32], strides = [1, 1]} : vector<1152x32xf32> to vector<288x32xf32>
    %9 = arith.maximumf %7, %8 : vector<288x32xf32>
    %10 = arith.maximumf %6, %9 : vector<288x32xf32>
    %c0_4 = arith.constant 0 : index
    %c0_5 = arith.constant 0 : index
    %11 = vector.load %arg3[%c0_4, %c0_5] : memref<1x32xf32, #tpu.memory_space<vmem>>, vector<1x32xf32>
    %12 = vector.broadcast %11 : vector<1x32xf32> to vector<288x32xf32>
    %13 = arith.addf %10, %12 : vector<288x32xf32>
    %cst_6 = arith.constant 0.000000e+00 : f32
    %14 = vector.broadcast %cst_6 : f32 to vector<288x32xf32>
    %15 = arith.maximumf %13, %14 : vector<288x32xf32>
    %16 = vector.extract_strided_slice %15 {offsets = [0, 0], sizes = [8, 32], strides = [1, 1]} : vector<288x32xf32> to vector<8x32xf32>
    %c0_7 = arith.constant 0 : index
    %c0_8 = arith.constant 0 : index
    %17 = vector.load %arg11[%c0_7, %c0_8] : memref<8x1152xf32, #tpu.memory_space<vmem>>, vector<8x32xf32>
    tpu.vector_store %arg11[%c0_7, %c0_8], %16 {strides = array<i32>} : memref<8x1152xf32, #tpu.memory_space<vmem>>, vector<8x32xf32>,
    %18 = vector.extract_strided_slice %15 {offsets = [8, 0], sizes = [8, 32], strides = [1, 1]} : vector<288x32xf32> to vector<8x32xf32>
    %c0_9 = arith.constant 0 : index
    %c32 = arith.constant 32 : index
    %19 = vector.load %arg11[%c0_9, %c32] : memref<8x1152xf32, #tpu.memory_space<vmem>>, vector<8x32xf32>
    tpu.vector_store %arg11[%c0_9, %c32], %18 {strides = array<i32>} : memref<8x1152xf32, #tpu.memory_space<vmem>>, vector<8x32xf32>,
    %20 = vector.extract_strided_slice %15 {offsets = [16, 0], sizes = [8, 32], strides = [1, 1]} : vector<288x32xf32> to vector<8x32xf32>
    %c0_10 = arith.constant 0 : index
    %c64 = arith.constant 64 : index
    %21 = vector.load %arg11[%c0_10, %c64] : memref<8x1152xf32, #tpu.memory_space<vmem>>, vector<8x32xf32>
    tpu.vector_store %arg11[%c0_10, %c64], %20 {strides = array<i32>} : memref<8x1152xf32, #tpu.memory_space<vmem>>, vector<8x32xf32>,
    %22 = vector.extract_strided_slice %15 {offsets = [24, 0], sizes = [8, 32], strides = [1, 1]} : vector<288x32xf32> to vector<8x32xf32>
    %c0_11 = arith.constant 0 : index
    %c96 = arith.constant 96 : index
    %23 = vector.load %arg11[%c0_11, %c96] : memref<8x1152xf32, #tpu.memory_space<vmem>>, vector<8x32xf32>
    tpu.vector_store %arg11[%c0_11, %c96], %22 {strides = array<i32>} : memref<8x1152xf32, #tpu.memory_space<vmem>>, vector<8x32xf32>,
    %24 = vector.extract_strided_slice %15 {offsets = [32, 0], sizes = [8, 32], strides = [1, 1]} : vector<288x32xf32> to vector<8x32xf32>
    %c0_12 = arith.constant 0 : index
    %c128 = arith.constant 128 : index
    %25 = vector.load %arg11[%c0_12, %c128] : memref<8x1152xf32, #tpu.memory_space<vmem>>, vector<8x32xf32>
    tpu.vector_store %arg11[%c0_12, %c128], %24 {strides = array<i32>} : memref<8x1152xf32, #tpu.memory_space<vmem>>, vector<8x32xf32>,
    %26 = vector.extract_strided_slice %15 {offsets = [40, 0], sizes = [8, 32], strides = [1, 1]} : vector<288x32xf32> to vector<8x32xf32>
    %c0_13 = arith.constant 0 : index
    %c160 = arith.constant 160 : index
    %27 = vector.load %arg11[%c0_13, %c160] : memref<8x1152xf32, #tpu.memory_space<vmem>>, vector<8x32xf32>
    tpu.vector_store %arg11[%c0_13, %c160], %26 {strides = array<i32>} : memref<8x1152xf32, #tpu.memory_space<vmem>>, vector<8x32xf32>,
    %28 = vector.extract_strided_slice %15 {offsets = [48, 0], sizes = [8, 32], strides = [1, 1]} : vector<288x32xf32> to vector<8x32xf32>
    %c0_14 = arith.constant 0 : index
    %c192 = arith.constant 192 : index
    %29 = vector.load %arg11[%c0_14, %c192] : memref<8x1152xf32, #tpu.memory_space<vmem>>, vector<8x32xf32>
    tpu.vector_store %arg11[%c0_14, %c192], %28 {strides = array<i32>} : memref<8x1152xf32, #tpu.memory_space<vmem>>, vector<8x32xf32>,
    %30 = vector.extract_strided_slice %15 {offsets = [56, 0], sizes = [8, 32], strides = [1, 1]} : vector<288x32xf32> to vector<8x32xf32>
    %c0_15 = arith.constant 0 : index
    %c224 = arith.constant 224 : index
    %31 = vector.load %arg11[%c0_15, %c224] : memref<8x1152xf32, #tpu.memory_space<vmem>>, vector<8x32xf32>
    tpu.vector_store %arg11[%c0_15, %c224], %30 {strides = array<i32>} : memref<8x1152xf32, #tpu.memory_space<vmem>>, vector<8x32xf32>,
    %32 = vector.extract_strided_slice %15 {offsets = [64, 0], sizes = [8, 32], strides = [1, 1]} : vector<288x32xf32> to vector<8x32xf32>
    %c0_16 = arith.constant 0 : index
    %c256 = arith.constant 256 : index
    %33 = vector.load %arg11[%c0_16, %c256] : memref<8x1152xf32, #tpu.memory_space<vmem>>, vector<8x32xf32>
    tpu.vector_store %arg11[%c0_16, %c256], %32 {strides = array<i32>} : memref<8x1152xf32, #tpu.memory_space<vmem>>, vector<8x32xf32>,
    %34 = vector.extract_strided_slice %15 {offsets = [72, 0], sizes = [8, 32], strides = [1, 1]} : vector<288x32xf32> to vector<8x32xf32>
    %c0_17 = arith.constant 0 : index
    %c288 = arith.constant 288 : index
    %35 = vector.load %arg11[%c0_17, %c288] : memref<8x1152xf32, #tpu.memory_space<vmem>>, vector<8x32xf32>
    tpu.vector_store %arg11[%c0_17, %c288], %34 {strides = array<i32>} : memref<8x1152xf32, #tpu.memory_space<vmem>>, vector<8x32xf32>,
    %36 = vector.extract_strided_slice %15 {offsets = [80, 0], sizes = [8, 32], strides = [1, 1]} : vector<288x32xf32> to vector<8x32xf32>
    %c0_18 = arith.constant 0 : index
    %c320 = arith.constant 320 : index
    %37 = vector.load %arg11[%c0_18, %c320] : memref<8x1152xf32, #tpu.memory_space<vmem>>, vector<8x32xf32>
    tpu.vector_store %arg11[%c0_18, %c320], %36 {strides = array<i32>} : memref<8x1152xf32, #tpu.memory_space<vmem>>, vector<8x32xf32>,
    %38 = vector.extract_strided_slice %15 {offsets = [88, 0], sizes = [8, 32], strides = [1, 1]} : vector<288x32xf32> to vector<8x32xf32>
    %c0_19 = arith.constant 0 : index
    %c352 = arith.constant 352 : index
    %39 = vector.load %arg11[%c0_19, %c352] : memref<8x1152xf32, #tpu.memory_space<vmem>>, vector<8x32xf32>
    tpu.vector_store %arg11[%c0_19, %c352], %38 {strides = array<i32>} : memref<8x1152xf32, #tpu.memory_space<vmem>>, vector<8x32xf32>,
    %40 = vector.extract_strided_slice %15 {offsets = [96, 0], sizes = [8, 32], strides = [1, 1]} : vector<288x32xf32> to vector<8x32xf32>
    %c0_20 = arith.constant 0 : index
    %c384 = arith.constant 384 : index
    %41 = vector.load %arg11[%c0_20, %c384] : memref<8x1152xf32, #tpu.memory_space<vmem>>, vector<8x32xf32>
    tpu.vector_store %arg11[%c0_20, %c384], %40 {strides = array<i32>} : memref<8x1152xf32, #tpu.memory_space<vmem>>, vector<8x32xf32>,
    %42 = vector.extract_strided_slice %15 {offsets = [104, 0], sizes = [8, 32], strides = [1, 1]} : vector<288x32xf32> to vector<8x32xf32>
    %c0_21 = arith.constant 0 : index
    %c416 = arith.constant 416 : index
    %43 = vector.load %arg11[%c0_21, %c416] : memref<8x1152xf32, #tpu.memory_space<vmem>>, vector<8x32xf32>
    tpu.vector_store %arg11[%c0_21, %c416], %42 {strides = array<i32>} : memref<8x1152xf32, #tpu.memory_space<vmem>>, vector<8x32xf32>,
    %44 = vector.extract_strided_slice %15 {offsets = [112, 0], sizes = [8, 32], strides = [1, 1]} : vector<288x32xf32> to vector<8x32xf32>
    %c0_22 = arith.constant 0 : index
    %c448 = arith.constant 448 : index
    %45 = vector.load %arg11[%c0_22, %c448] : memref<8x1152xf32, #tpu.memory_space<vmem>>, vector<8x32xf32>
    tpu.vector_store %arg11[%c0_22, %c448], %44 {strides = array<i32>} : memref<8x1152xf32, #tpu.memory_space<vmem>>, vector<8x32xf32>,
    %46 = vector.extract_strided_slice %15 {offsets = [120, 0], sizes = [8, 32], strides = [1, 1]} : vector<288x32xf32> to vector<8x32xf32>
    %c0_23 = arith.constant 0 : index
    %c480 = arith.constant 480 : index
    %47 = vector.load %arg11[%c0_23, %c480] : memref<8x1152xf32, #tpu.memory_space<vmem>>, vector<8x32xf32>
    tpu.vector_store %arg11[%c0_23, %c480], %46 {strides = array<i32>} : memref<8x1152xf32, #tpu.memory_space<vmem>>, vector<8x32xf32>,
    %48 = vector.extract_strided_slice %15 {offsets = [128, 0], sizes = [8, 32], strides = [1, 1]} : vector<288x32xf32> to vector<8x32xf32>
    %c0_24 = arith.constant 0 : index
    %c512 = arith.constant 512 : index
    %49 = vector.load %arg11[%c0_24, %c512] : memref<8x1152xf32, #tpu.memory_space<vmem>>, vector<8x32xf32>
    tpu.vector_store %arg11[%c0_24, %c512], %48 {strides = array<i32>} : memref<8x1152xf32, #tpu.memory_space<vmem>>, vector<8x32xf32>,
    %50 = vector.extract_strided_slice %15 {offsets = [136, 0], sizes = [8, 32], strides = [1, 1]} : vector<288x32xf32> to vector<8x32xf32>
    %c0_25 = arith.constant 0 : index
    %c544 = arith.constant 544 : index
    %51 = vector.load %arg11[%c0_25, %c544] : memref<8x1152xf32, #tpu.memory_space<vmem>>, vector<8x32xf32>
    tpu.vector_store %arg11[%c0_25, %c544], %50 {strides = array<i32>} : memref<8x1152xf32, #tpu.memory_space<vmem>>, vector<8x32xf32>,
    %52 = vector.extract_strided_slice %15 {offsets = [144, 0], sizes = [8, 32], strides = [1, 1]} : vector<288x32xf32> to vector<8x32xf32>
    %c0_26 = arith.constant 0 : index
    %c576 = arith.constant 576 : index
    %53 = vector.load %arg11[%c0_26, %c576] : memref<8x1152xf32, #tpu.memory_space<vmem>>, vector<8x32xf32>
    tpu.vector_store %arg11[%c0_26, %c576], %52 {strides = array<i32>} : memref<8x1152xf32, #tpu.memory_space<vmem>>, vector<8x32xf32>,
    %54 = vector.extract_strided_slice %15 {offsets = [152, 0], sizes = [8, 32], strides = [1, 1]} : vector<288x32xf32> to vector<8x32xf32>
    %c0_27 = arith.constant 0 : index
    %c608 = arith.constant 608 : index
    %55 = vector.load %arg11[%c0_27, %c608] : memref<8x1152xf32, #tpu.memory_space<vmem>>, vector<8x32xf32>
    tpu.vector_store %arg11[%c0_27, %c608], %54 {strides = array<i32>} : memref<8x1152xf32, #tpu.memory_space<vmem>>, vector<8x32xf32>,
    %56 = vector.extract_strided_slice %15 {offsets = [160, 0], sizes = [8, 32], strides = [1, 1]} : vector<288x32xf32> to vector<8x32xf32>
    %c0_28 = arith.constant 0 : index
    %c640 = arith.constant 640 : index
    %57 = vector.load %arg11[%c0_28, %c640] : memref<8x1152xf32, #tpu.memory_space<vmem>>, vector<8x32xf32>
    tpu.vector_store %arg11[%c0_28, %c640], %56 {strides = array<i32>} : memref<8x1152xf32, #tpu.memory_space<vmem>>, vector<8x32xf32>,
    %58 = vector.extract_strided_slice %15 {offsets = [168, 0], sizes = [8, 32], strides = [1, 1]} : vector<288x32xf32> to vector<8x32xf32>
    %c0_29 = arith.constant 0 : index
    %c672 = arith.constant 672 : index
    %59 = vector.load %arg11[%c0_29, %c672] : memref<8x1152xf32, #tpu.memory_space<vmem>>, vector<8x32xf32>
    tpu.vector_store %arg11[%c0_29, %c672], %58 {strides = array<i32>} : memref<8x1152xf32, #tpu.memory_space<vmem>>, vector<8x32xf32>,
    %60 = vector.extract_strided_slice %15 {offsets = [176, 0], sizes = [8, 32], strides = [1, 1]} : vector<288x32xf32> to vector<8x32xf32>
    %c0_30 = arith.constant 0 : index
    %c704 = arith.constant 704 : index
    %61 = vector.load %arg11[%c0_30, %c704] : memref<8x1152xf32, #tpu.memory_space<vmem>>, vector<8x32xf32>
    tpu.vector_store %arg11[%c0_30, %c704], %60 {strides = array<i32>} : memref<8x1152xf32, #tpu.memory_space<vmem>>, vector<8x32xf32>,
    %62 = vector.extract_strided_slice %15 {offsets = [184, 0], sizes = [8, 32], strides = [1, 1]} : vector<288x32xf32> to vector<8x32xf32>
    %c0_31 = arith.constant 0 : index
    %c736 = arith.constant 736 : index
    %63 = vector.load %arg11[%c0_31, %c736] : memref<8x1152xf32, #tpu.memory_space<vmem>>, vector<8x32xf32>
    tpu.vector_store %arg11[%c0_31, %c736], %62 {strides = array<i32>} : memref<8x1152xf32, #tpu.memory_space<vmem>>, vector<8x32xf32>,
    %64 = vector.extract_strided_slice %15 {offsets = [192, 0], sizes = [8, 32], strides = [1, 1]} : vector<288x32xf32> to vector<8x32xf32>
    %c0_32 = arith.constant 0 : index
    %c768 = arith.constant 768 : index
    %65 = vector.load %arg11[%c0_32, %c768] : memref<8x1152xf32, #tpu.memory_space<vmem>>, vector<8x32xf32>
    tpu.vector_store %arg11[%c0_32, %c768], %64 {strides = array<i32>} : memref<8x1152xf32, #tpu.memory_space<vmem>>, vector<8x32xf32>,
    %66 = vector.extract_strided_slice %15 {offsets = [200, 0], sizes = [8, 32], strides = [1, 1]} : vector<288x32xf32> to vector<8x32xf32>
    %c0_33 = arith.constant 0 : index
    %c800 = arith.constant 800 : index
    %67 = vector.load %arg11[%c0_33, %c800] : memref<8x1152xf32, #tpu.memory_space<vmem>>, vector<8x32xf32>
    tpu.vector_store %arg11[%c0_33, %c800], %66 {strides = array<i32>} : memref<8x1152xf32, #tpu.memory_space<vmem>>, vector<8x32xf32>,
    %68 = vector.extract_strided_slice %15 {offsets = [208, 0], sizes = [8, 32], strides = [1, 1]} : vector<288x32xf32> to vector<8x32xf32>
    %c0_34 = arith.constant 0 : index
    %c832 = arith.constant 832 : index
    %69 = vector.load %arg11[%c0_34, %c832] : memref<8x1152xf32, #tpu.memory_space<vmem>>, vector<8x32xf32>
    tpu.vector_store %arg11[%c0_34, %c832], %68 {strides = array<i32>} : memref<8x1152xf32, #tpu.memory_space<vmem>>, vector<8x32xf32>,
    %70 = vector.extract_strided_slice %15 {offsets = [216, 0], sizes = [8, 32], strides = [1, 1]} : vector<288x32xf32> to vector<8x32xf32>
    %c0_35 = arith.constant 0 : index
    %c864 = arith.constant 864 : index
    %71 = vector.load %arg11[%c0_35, %c864] : memref<8x1152xf32, #tpu.memory_space<vmem>>, vector<8x32xf32>
    tpu.vector_store %arg11[%c0_35, %c864], %70 {strides = array<i32>} : memref<8x1152xf32, #tpu.memory_space<vmem>>, vector<8x32xf32>,
    %72 = vector.extract_strided_slice %15 {offsets = [224, 0], sizes = [8, 32], strides = [1, 1]} : vector<288x32xf32> to vector<8x32xf32>
    %c0_36 = arith.constant 0 : index
    %c896 = arith.constant 896 : index
    %73 = vector.load %arg11[%c0_36, %c896] : memref<8x1152xf32, #tpu.memory_space<vmem>>, vector<8x32xf32>
    tpu.vector_store %arg11[%c0_36, %c896], %72 {strides = array<i32>} : memref<8x1152xf32, #tpu.memory_space<vmem>>, vector<8x32xf32>,
    %74 = vector.extract_strided_slice %15 {offsets = [232, 0], sizes = [8, 32], strides = [1, 1]} : vector<288x32xf32> to vector<8x32xf32>
    %c0_37 = arith.constant 0 : index
    %c928 = arith.constant 928 : index
    %75 = vector.load %arg11[%c0_37, %c928] : memref<8x1152xf32, #tpu.memory_space<vmem>>, vector<8x32xf32>
    tpu.vector_store %arg11[%c0_37, %c928], %74 {strides = array<i32>} : memref<8x1152xf32, #tpu.memory_space<vmem>>, vector<8x32xf32>,
    %76 = vector.extract_strided_slice %15 {offsets = [240, 0], sizes = [8, 32], strides = [1, 1]} : vector<288x32xf32> to vector<8x32xf32>
    %c0_38 = arith.constant 0 : index
    %c960 = arith.constant 960 : index
    %77 = vector.load %arg11[%c0_38, %c960] : memref<8x1152xf32, #tpu.memory_space<vmem>>, vector<8x32xf32>
    tpu.vector_store %arg11[%c0_38, %c960], %76 {strides = array<i32>} : memref<8x1152xf32, #tpu.memory_space<vmem>>, vector<8x32xf32>,
    %78 = vector.extract_strided_slice %15 {offsets = [248, 0], sizes = [8, 32], strides = [1, 1]} : vector<288x32xf32> to vector<8x32xf32>
    %c0_39 = arith.constant 0 : index
    %c992 = arith.constant 992 : index
    %79 = vector.load %arg11[%c0_39, %c992] : memref<8x1152xf32, #tpu.memory_space<vmem>>, vector<8x32xf32>
    tpu.vector_store %arg11[%c0_39, %c992], %78 {strides = array<i32>} : memref<8x1152xf32, #tpu.memory_space<vmem>>, vector<8x32xf32>,
    %80 = vector.extract_strided_slice %15 {offsets = [256, 0], sizes = [8, 32], strides = [1, 1]} : vector<288x32xf32> to vector<8x32xf32>
    %c0_40 = arith.constant 0 : index
    %c1024 = arith.constant 1024 : index
    %81 = vector.load %arg11[%c0_40, %c1024] : memref<8x1152xf32, #tpu.memory_space<vmem>>, vector<8x32xf32>
    tpu.vector_store %arg11[%c0_40, %c1024], %80 {strides = array<i32>} : memref<8x1152xf32, #tpu.memory_space<vmem>>, vector<8x32xf32>,
    %82 = vector.extract_strided_slice %15 {offsets = [264, 0], sizes = [8, 32], strides = [1, 1]} : vector<288x32xf32> to vector<8x32xf32>
    %c0_41 = arith.constant 0 : index
    %c1056 = arith.constant 1056 : index
    %83 = vector.load %arg11[%c0_41, %c1056] : memref<8x1152xf32, #tpu.memory_space<vmem>>, vector<8x32xf32>
    tpu.vector_store %arg11[%c0_41, %c1056], %82 {strides = array<i32>} : memref<8x1152xf32, #tpu.memory_space<vmem>>, vector<8x32xf32>,
    %84 = vector.extract_strided_slice %15 {offsets = [272, 0], sizes = [8, 32], strides = [1, 1]} : vector<288x32xf32> to vector<8x32xf32>
    %c0_42 = arith.constant 0 : index
    %c1088 = arith.constant 1088 : index
    %85 = vector.load %arg11[%c0_42, %c1088] : memref<8x1152xf32, #tpu.memory_space<vmem>>, vector<8x32xf32>
    tpu.vector_store %arg11[%c0_42, %c1088], %84 {strides = array<i32>} : memref<8x1152xf32, #tpu.memory_space<vmem>>, vector<8x32xf32>,
    %86 = vector.extract_strided_slice %15 {offsets = [280, 0], sizes = [8, 32], strides = [1, 1]} : vector<288x32xf32> to vector<8x32xf32>
    %c0_43 = arith.constant 0 : index
    %c1120 = arith.constant 1120 : index
    %87 = vector.load %arg11[%c0_43, %c1120] : memref<8x1152xf32, #tpu.memory_space<vmem>>, vector<8x32xf32>
    tpu.vector_store %arg11[%c0_43, %c1120], %86 {strides = array<i32>} : memref<8x1152xf32, #tpu.memory_space<vmem>>, vector<8x32xf32>,
    %c0_44 = arith.constant 0 : index
    %c0_45 = arith.constant 0 : index
    %88 = vector.load %arg11[%c0_44, %c0_45] : memref<8x1152xf32, #tpu.memory_space<vmem>>, vector<8x1152xf32>
    %89 = arith.truncf %88 : vector<8x1152xf32> to vector<8x1152xbf16>
    %c0_46 = arith.constant 0 : index
    %c0_47 = arith.constant 0 : index
    %90 = vector.load %arg4[%c0_46, %c0_47] : memref<1152x256xbf16, #tpu.memory_space<vmem>>, vector<1152x256xbf16>
    %cst_48 = arith.constant dense<0.000000e+00> : vector<8x256xf32>
    %91 = tpu.matmul %89, %90, %cst_48 {dimension_numbers = #tpu.dot_dimension_numbers<[1], [0], [0], [1], [0, 0, 1, 1], [], []>} : vector<8x1152xbf16>, vector<1152x256xbf16>, vector<8x256xf32> -> vector<8x256xf32>
    %c0_49 = arith.constant 0 : index
    %c0_50 = arith.constant 0 : index
    %92 = vector.load %arg5[%c0_49, %c0_50] : memref<1x256xf32, #tpu.memory_space<vmem>>, vector<1x256xf32>
    %93 = vector.broadcast %92 : vector<1x256xf32> to vector<8x256xf32>
    %94 = arith.addf %91, %93 : vector<8x256xf32>
    %cst_51 = arith.constant 0.000000e+00 : f32
    %95 = vector.broadcast %cst_51 : f32 to vector<8x256xf32>
    %96 = arith.maximumf %94, %95 : vector<8x256xf32>
    %97 = arith.truncf %96 : vector<8x256xf32> to vector<8x256xbf16>
    %c0_52 = arith.constant 0 : index
    %c0_53 = arith.constant 0 : index
    %98 = vector.load %arg6[%c0_52, %c0_53] : memref<256x128xbf16, #tpu.memory_space<vmem>>, vector<256x128xbf16>
    %cst_54 = arith.constant dense<0.000000e+00> : vector<8x128xf32>
    %99 = tpu.matmul %97, %98, %cst_54 {dimension_numbers = #tpu.dot_dimension_numbers<[1], [0], [0], [1], [0, 0, 1, 1], [], []>} : vector<8x256xbf16>, vector<256x128xbf16>, vector<8x128xf32> -> vector<8x128xf32>
    %c0_55 = arith.constant 0 : index
    %c0_56 = arith.constant 0 : index
    %100 = vector.load %arg7[%c0_55, %c0_56] : memref<1x128xf32, #tpu.memory_space<vmem>>, vector<1x128xf32>
    %101 = vector.broadcast %100 : vector<1x128xf32> to vector<8x128xf32>
    %102 = arith.addf %99, %101 : vector<8x128xf32>
    %cst_57 = arith.constant 0.000000e+00 : f32
    %103 = vector.broadcast %cst_57 : f32 to vector<8x128xf32>
    %104 = arith.maximumf %102, %103 : vector<8x128xf32>
    %c0_58 = arith.constant 0 : index
    %c0_59 = arith.constant 0 : index
    %105 = vector.load %arg8[%c0_58, %c0_59] : memref<128x128xf32, #tpu.memory_space<vmem>>, vector<128x128xf32>
    %cst_60 = arith.constant dense<0.000000e+00> : vector<8x128xf32>
    %106 = tpu.matmul %104, %105, %cst_60 {dimension_numbers = #tpu.dot_dimension_numbers<[1], [0], [0], [1], [0, 0, 1, 1], [], []>} : vector<8x128xf32>, vector<128x128xf32>, vector<8x128xf32> -> vector<8x128xf32>
    %c0_61 = arith.constant 0 : index
    %c0_62 = arith.constant 0 : index
    %107 = vector.load %arg9[%c0_61, %c0_62] : memref<1x128xf32, #tpu.memory_space<vmem>>, vector<1x128xf32>
    %108 = vector.broadcast %107 : vector<1x128xf32> to vector<8x128xf32>
    %109 = arith.addf %106, %108 : vector<8x128xf32>
    %c0_63 = arith.constant 0 : index
    %c0_64 = arith.constant 0 : index
    %110 = vector.load %arg10[%c0_63, %c0_64] : memref<8x128xf32, #tpu.memory_space<vmem>>, vector<8x128xf32>
    tpu.vector_store %arg10[%c0_63, %c0_64], %109 {strides = array<i32>} : memref<8x128xf32, #tpu.memory_space<vmem>>, vector<8x128xf32>,
    return
  }
  func.func @transform_0(%arg0: i32) -> (i32, i32, i32) {
    %c0_i32 = arith.constant 0 : i32
    %c0_i32_0 = arith.constant 0 : i32
    %c0_i32_1 = arith.constant 0 : i32
    return %arg0, %c0_i32, %c0_i32_0 : i32, i32, i32
  }
  func.func @transform_1(%arg0: i32) -> (i32, i32) {
    %c0_i32 = arith.constant 0 : i32
    %c0_i32_0 = arith.constant 0 : i32
    %c0_i32_1 = arith.constant 0 : i32
    return %c0_i32, %c0_i32_0 : i32, i32
  }
  func.func @transform_2(%arg0: i32) -> (i32, i32) {
    %c0_i32 = arith.constant 0 : i32
    %c0_i32_0 = arith.constant 0 : i32
    %c0_i32_1 = arith.constant 0 : i32
    return %c0_i32, %c0_i32_0 : i32, i32
  }
  func.func @transform_3(%arg0: i32) -> (i32, i32) {
    %c0_i32 = arith.constant 0 : i32
    %c0_i32_0 = arith.constant 0 : i32
    %c0_i32_1 = arith.constant 0 : i32
    return %c0_i32, %c0_i32_0 : i32, i32
  }
  func.func @transform_4(%arg0: i32) -> (i32, i32) {
    %c0_i32 = arith.constant 0 : i32
    %c0_i32_0 = arith.constant 0 : i32
    %c0_i32_1 = arith.constant 0 : i32
    return %c0_i32, %c0_i32_0 : i32, i32
  }
  func.func @transform_5(%arg0: i32) -> (i32, i32) {
    %c0_i32 = arith.constant 0 : i32
    %c0_i32_0 = arith.constant 0 : i32
    %c0_i32_1 = arith.constant 0 : i32
    return %c0_i32, %c0_i32_0 : i32, i32
  }
  func.func @transform_6(%arg0: i32) -> (i32, i32) {
    %c0_i32 = arith.constant 0 : i32
    %c0_i32_0 = arith.constant 0 : i32
    %c0_i32_1 = arith.constant 0 : i32
    return %c0_i32, %c0_i32_0 : i32, i32
  }
  func.func @transform_7(%arg0: i32) -> (i32, i32) {
    %c0_i32 = arith.constant 0 : i32
    %c0_i32_0 = arith.constant 0 : i32
    %c0_i32_1 = arith.constant 0 : i32
    return %c0_i32, %c0_i32_0 : i32, i32
  }
  func.func @transform_8(%arg0: i32) -> (i32, i32) {
    %c0_i32 = arith.constant 0 : i32
    %c0_i32_0 = arith.constant 0 : i32
    %c0_i32_1 = arith.constant 0 : i32
    return %c0_i32, %c0_i32_0 : i32, i32
  }
  func.func @transform_9(%arg0: i32) -> (i32, i32) {
    %c0_i32 = arith.constant 0 : i32
    %c0_i32_0 = arith.constant 0 : i32
    return %arg0, %c0_i32 : i32, i32
  }
}

</mosaic_0001>

<llo_original>
// kernel: simple_cnn_forward.1
$region0: #{simple_cnn_forward.1}
  #allocation0 [shape = 'u32[]', space=smem, size = 0x4, offset = 0x4, fixed_abs, tag = 'smem constant byte address 0x4 - core index']
  #allocation1 [shape = 'u32[144,128]{1,0:T(1,128)}', space=vmem, size = 0x12000, scoped, tag = 'internal scratch']
  #allocation2 [shape = 'f32[8,1152]{1,0:T(8,128)}', space=vmem, size = 0x9000, scoped, tag = 'scratch operand']
  %s0 = inlined_call_operand.vmem [shape: bf16[1,1152,25], index: 0, kind: input, shape index: {}]
  %s1 = inlined_call_operand.vmem [shape: bf16[25,32], index: 1, kind: input, shape index: {}]
  %s2 = inlined_call_operand.vmem [shape: f32[1,32], index: 2, kind: input, shape index: {}]
  %s3 = inlined_call_operand.vmem [shape: bf16[1152,256], index: 3, kind: input, shape index: {}]
  %s4 = inlined_call_operand.vmem [shape: f32[1,256], index: 4, kind: input, shape index: {}]
  %s5 = inlined_call_operand.vmem [shape: bf16[256,128], index: 5, kind: input, shape index: {}]
  %s6 = inlined_call_operand.vmem [shape: f32[1,128], index: 6, kind: input, shape index: {}]
  %s7 = inlined_call_operand.vmem [shape: f32[128,128], index: 7, kind: input, shape index: {}]
  %s8 = inlined_call_operand.vmem [shape: f32[1,128], index: 8, kind: input, shape index: {}]
  %s9 = inlined_call_operand.vmem [shape: f32[8,128], index: 9, kind: output, shape index: {}]
  %s10 = sld [smem:[#allocation0]]
  $region46: #{simple_cnn_forward.1} parent=0
    _
  %s12 = ssub.s32 1, %s10
  %s13 = scalar_select 0, %s12, %s10
  // Predicated region
  $region2: #{simple_cnn_forward.1} parent=0 // pred_check
    _
  $region3: #{simple_cnn_forward.1} parent=0 // pred_check_branch
    %15 = sbr.rel (0) target = $region5
  $region4: #{simple_cnn_forward.1} parent=0 // pred_region
    _
  $region5: #{simple_cnn_forward.1} parent=0 // pred_fallthru
    _
  // Predicated region
  $region6: #{simple_cnn_forward.1} parent=0 // pred_check
    _
  $region7: #{simple_cnn_forward.1} parent=0 // pred_check_branch
    %17 = sbr.rel (0) target = $region9
  $region8: #{simple_cnn_forward.1} parent=0 // pred_region
    _
  $region9: #{simple_cnn_forward.1} parent=0 // pred_fallthru
    _
  // Predicated region
  $region10: #{simple_cnn_forward.1} parent=0 // pred_check
    _
  $region11: #{simple_cnn_forward.1} parent=0 // pred_check_branch
    %19 = sbr.rel (0) target = $region13
  $region12: #{simple_cnn_forward.1} parent=0 // pred_region
    _
  $region13: #{simple_cnn_forward.1} parent=0 // pred_fallthru
    _
  // Predicated region
  $region14: #{simple_cnn_forward.1} parent=0 // pred_check
    _
  $region15: #{simple_cnn_forward.1} parent=0 // pred_check_branch
    %21 = sbr.rel (0) target = $region17
  $region16: #{simple_cnn_forward.1} parent=0 // pred_region
    _
  $region17: #{simple_cnn_forward.1} parent=0 // pred_fallthru
    _
  // Predicated region
  $region18: #{simple_cnn_forward.1} parent=0 // pred_check
    _
  $region19: #{simple_cnn_forward.1} parent=0 // pred_check_branch
    %23 = sbr.rel (0) target = $region21
  $region20: #{simple_cnn_forward.1} parent=0 // pred_region
    _
  $region21: #{simple_cnn_forward.1} parent=0 // pred_fallthru
    _
  // Predicated region
  $region22: #{simple_cnn_forward.1} parent=0 // pred_check
    _
  $region23: #{simple_cnn_forward.1} parent=0 // pred_check_branch
    %25 = sbr.rel (0) target = $region25
  $region24: #{simple_cnn_forward.1} parent=0 // pred_region
    _
  $region25: #{simple_cnn_forward.1} parent=0 // pred_fallthru
    _
  // Predicated region
  $region26: #{simple_cnn_forward.1} parent=0 // pred_check
    _
  $region27: #{simple_cnn_forward.1} parent=0 // pred_check_branch
    %27 = sbr.rel (0) target = $region29
  $region28: #{simple_cnn_forward.1} parent=0 // pred_region
    _
  $region29: #{simple_cnn_forward.1} parent=0 // pred_fallthru
    _
  // Predicated region
  $region30: #{simple_cnn_forward.1} parent=0 // pred_check
    _
  $region31: #{simple_cnn_forward.1} parent=0 // pred_check_branch
    %29 = sbr.rel (0) target = $region33
  $region32: #{simple_cnn_forward.1} parent=0 // pred_region
    _
  $region33: #{simple_cnn_forward.1} parent=0 // pred_fallthru
    _
  // Predicated region
  $region34: #{simple_cnn_forward.1} parent=0 // pred_check
    _
  $region35: #{simple_cnn_forward.1} parent=0 // pred_check_branch
    %31 = sbr.rel (0) target = $region37
  $region36: #{simple_cnn_forward.1} parent=0 // pred_region
    _
  $region37: #{simple_cnn_forward.1} parent=0 // pred_fallthru
    _
  %v33 = vld [vmem:[%s0] sm:$0xf]
  %v34 = vld [vmem:[%s0 + $0x4] sm:$0xf]
  %v35 = vld [vmem:[%s0 + $0x8] sm:$0xf]
  %v36 = vld [vmem:[%s0 + $0xc] sm:$0xf]
  %v37 = vld [vmem:[%s0 + $0x10] sm:$0xf]
  %v38 = vld [vmem:[%s0 + $0x14] sm:$0xf]
  %v39 = vld [vmem:[%s0 + $0x18] sm:$0xf]
  %v40 = vld [vmem:[%s0 + $0x1c] sm:$0xf]
  %v41 = vld [vmem:[%s0 + $0x20] sm:$0xf]
  %v42 = vld [vmem:[%s0 + $0x24] sm:$0xf]
  %v43 = vld [vmem:[%s0 + $0x28] sm:$0xf]
  %v44 = vld [vmem:[%s0 + $0x2c] sm:$0xf]
  %v45 = vld [vmem:[%s0 + $0x30] sm:$0xf]
  %v46 = vld [vmem:[%s0 + $0x34] sm:$0xf]
  %v47 = vld [vmem:[%s0 + $0x38] sm:$0xf]
  %v48 = vld [vmem:[%s0 + $0x3c] sm:$0xf]
  %v49 = vld [vmem:[%s0 + $0x40] sm:$0xf]
  %v50 = vld [vmem:[%s0 + $0x44] sm:$0xf]
  %v51 = vld [vmem:[%s0 + $0x48] sm:$0xf]
  %v52 = vld [vmem:[%s0 + $0x4c] sm:$0xf]
  %v53 = vld [vmem:[%s0 + $0x50] sm:$0xf]
  %v54 = vld [vmem:[%s0 + $0x54] sm:$0xf]
  %v55 = vld [vmem:[%s0 + $0x58] sm:$0xf]
  %v56 = vld [vmem:[%s0 + $0x5c] sm:$0xf]
  %v57 = vld [vmem:[%s0 + $0x60] sm:$0xf]
  %v58 = vld [vmem:[%s0 + $0x64] sm:$0xf]
  %v59 = vld [vmem:[%s0 + $0x68] sm:$0xf]
  %v60 = vld [vmem:[%s0 + $0x6c] sm:$0xf]
  %v61 = vld [vmem:[%s0 + $0x70] sm:$0xf]
  %v62 = vld [vmem:[%s0 + $0x74] sm:$0xf]
  %v63 = vld [vmem:[%s0 + $0x78] sm:$0xf]
  %v64 = vld [vmem:[%s0 + $0x7c] sm:$0xf]
  %v65 = vld [vmem:[%s0 + $0x80] sm:$0xf]
  %v66 = vld [vmem:[%s0 + $0x84] sm:$0xf]
  %v67 = vld [vmem:[%s0 + $0x88] sm:$0xf]
  %v68 = vld [vmem:[%s0 + $0x8c] sm:$0xf]
  %v69 = vld [vmem:[%s0 + $0x90] sm:$0xf]
  %v70 = vld [vmem:[%s0 + $0x94] sm:$0xf]
  %v71 = vld [vmem:[%s0 + $0x98] sm:$0xf]
  %v72 = vld [vmem:[%s0 + $0x9c] sm:$0xf]
  %v73 = vld [vmem:[%s0 + $0xa0] sm:$0xf]
  %v74 = vld [vmem:[%s0 + $0xa4] sm:$0xf]
  %v75 = vld [vmem:[%s0 + $0xa8] sm:$0xf]
  %v76 = vld [vmem:[%s0 + $0xac] sm:$0xf]
  %v77 = vld [vmem:[%s0 + $0xb0] sm:$0xf]
  %v78 = vld [vmem:[%s0 + $0xb4] sm:$0xf]
  %v79 = vld [vmem:[%s0 + $0xb8] sm:$0xf]
  %v80 = vld [vmem:[%s0 + $0xbc] sm:$0xf]
  %v81 = vld [vmem:[%s0 + $0xc0] sm:$0xf]
  %v82 = vld [vmem:[%s0 + $0xc4] sm:$0xf]
  %v83 = vld [vmem:[%s0 + $0xc8] sm:$0xf]
  %v84 = vld [vmem:[%s0 + $0xcc] sm:$0xf]
  %v85 = vld [vmem:[%s0 + $0xd0] sm:$0xf]
  %v86 = vld [vmem:[%s0 + $0xd4] sm:$0xf]
  %v87 = vld [vmem:[%s0 + $0xd8] sm:$0xf]
  %v88 = vld [vmem:[%s0 + $0xdc] sm:$0xf]
  %v89 = vld [vmem:[%s0 + $0xe0] sm:$0xf]
  %v90 = vld [vmem:[%s0 + $0xe4] sm:$0xf]
  %v91 = vld [vmem:[%s0 + $0xe8] sm:$0xf]
  %v92 = vld [vmem:[%s0 + $0xec] sm:$0xf]
  %v93 = vld [vmem:[%s0 + $0xf0] sm:$0xf]
  %v94 = vld [vmem:[%s0 + $0xf4] sm:$0xf]
  %v95 = vld [vmem:[%s0 + $0xf8] sm:$0xf]
  %v96 = vld [vmem:[%s0 + $0xfc] sm:$0xf]
  %v97 = vld [vmem:[%s0 + $0x100] sm:$0xf]
  %v98 = vld [vmem:[%s0 + $0x104] sm:$0xf]
  %v99 = vld [vmem:[%s0 + $0x108] sm:$0xf]
  %v100 = vld [vmem:[%s0 + $0x10c] sm:$0xf]
  %v101 = vld [vmem:[%s0 + $0x110] sm:$0xf]
  %v102 = vld [vmem:[%s0 + $0x114] sm:$0xf]
  %v103 = vld [vmem:[%s0 + $0x118] sm:$0xf]
  %v104 = vld [vmem:[%s0 + $0x11c] sm:$0xf]
  %v105 = vld [vmem:[%s0 + $0x120] sm:$0xf]
  %v106 = vld [vmem:[%s0 + $0x124] sm:$0xf]
  %v107 = vld [vmem:[%s0 + $0x128] sm:$0xf]
  %v108 = vld [vmem:[%s0 + $0x12c] sm:$0xf]
  %v109 = vld [vmem:[%s0 + $0x130] sm:$0xf]
  %v110 = vld [vmem:[%s0 + $0x134] sm:$0xf]
  %v111 = vld [vmem:[%s0 + $0x138] sm:$0xf]
  %v112 = vld [vmem:[%s0 + $0x13c] sm:$0xf]
  %v113 = vld [vmem:[%s0 + $0x140] sm:$0xf]
  %v114 = vld [vmem:[%s0 + $0x144] sm:$0xf]
  %v115 = vld [vmem:[%s0 + $0x148] sm:$0xf]
  %v116 = vld [vmem:[%s0 + $0x14c] sm:$0xf]
  %v117 = vld [vmem:[%s0 + $0x150] sm:$0xf]
  %v118 = vld [vmem:[%s0 + $0x154] sm:$0xf]
  %v119 = vld [vmem:[%s0 + $0x158] sm:$0xf]
  %v120 = vld [vmem:[%s0 + $0x15c] sm:$0xf]
  %v121 = vld [vmem:[%s0 + $0x160] sm:$0xf]
  %v122 = vld [vmem:[%s0 + $0x164] sm:$0xf]
  %v123 = vld [vmem:[%s0 + $0x168] sm:$0xf]
  %v124 = vld [vmem:[%s0 + $0x16c] sm:$0xf]
  %v125 = vld [vmem:[%s0 + $0x170] sm:$0xf]
  %v126 = vld [vmem:[%s0 + $0x174] sm:$0xf]
  %v127 = vld [vmem:[%s0 + $0x178] sm:$0xf]
  %v128 = vld [vmem:[%s0 + $0x17c] sm:$0xf]
  %v129 = vld [vmem:[%s0 + $0x180] sm:$0xf]
  %v130 = vld [vmem:[%s0 + $0x184] sm:$0xf]
  %v131 = vld [vmem:[%s0 + $0x188] sm:$0xf]
  %v132 = vld [vmem:[%s0 + $0x18c] sm:$0xf]
  %v133 = vld [vmem:[%s0 + $0x190] sm:$0xf]
  %v134 = vld [vmem:[%s0 + $0x194] sm:$0xf]
  %v135 = vld [vmem:[%s0 + $0x198] sm:$0xf]
  %v136 = vld [vmem:[%s0 + $0x19c] sm:$0xf]
  %v137 = vld [vmem:[%s0 + $0x1a0] sm:$0xf]
  %v138 = vld [vmem:[%s0 + $0x1a4] sm:$0xf]
  %v139 = vld [vmem:[%s0 + $0x1a8] sm:$0xf]
  %v140 = vld [vmem:[%s0 + $0x1ac] sm:$0xf]
  %v141 = vld [vmem:[%s0 + $0x1b0] sm:$0xf]
  %v142 = vld [vmem:[%s0 + $0x1b4] sm:$0xf]
  %v143 = vld [vmem:[%s0 + $0x1b8] sm:$0xf]
  %v144 = vld [vmem:[%s0 + $0x1bc] sm:$0xf]
  %v145 = vld [vmem:[%s0 + $0x1c0] sm:$0xf]
  %v146 = vld [vmem:[%s0 + $0x1c4] sm:$0xf]
  %v147 = vld [vmem:[%s0 + $0x1c8] sm:$0xf]
  %v148 = vld [vmem:[%s0 + $0x1cc] sm:$0xf]
  %v149 = vld [vmem:[%s0 + $0x1d0] sm:$0xf]
  %v150 = vld [vmem:[%s0 + $0x1d4] sm:$0xf]
  %v151 = vld [vmem:[%s0 + $0x1d8] sm:$0xf]
  %v152 = vld [vmem:[%s0 + $0x1dc] sm:$0xf]
  %v153 = vld [vmem:[%s0 + $0x1e0] sm:$0xf]
  %v154 = vld [vmem:[%s0 + $0x1e4] sm:$0xf]
  %v155 = vld [vmem:[%s0 + $0x1e8] sm:$0xf]
  %v156 = vld [vmem:[%s0 + $0x1ec] sm:$0xf]
  %v157 = vld [vmem:[%s0 + $0x1f0] sm:$0xf]
  %v158 = vld [vmem:[%s0 + $0x1f4] sm:$0xf]
  %v159 = vld [vmem:[%s0 + $0x1f8] sm:$0xf]
  %v160 = vld [vmem:[%s0 + $0x1fc] sm:$0xf]
  %v161 = vld [vmem:[%s0 + $0x200] sm:$0xf]
  %v162 = vld [vmem:[%s0 + $0x204] sm:$0xf]
  %v163 = vld [vmem:[%s0 + $0x208] sm:$0xf]
  %v164 = vld [vmem:[%s0 + $0x20c] sm:$0xf]
  %v165 = vld [vmem:[%s0 + $0x210] sm:$0xf]
  %v166 = vld [vmem:[%s0 + $0x214] sm:$0xf]
  %v167 = vld [vmem:[%s0 + $0x218] sm:$0xf]
  %v168 = vld [vmem:[%s0 + $0x21c] sm:$0xf]
  %v169 = vld [vmem:[%s0 + $0x220] sm:$0xf]
  %v170 = vld [vmem:[%s0 + $0x224] sm:$0xf]
  %v171 = vld [vmem:[%s0 + $0x228] sm:$0xf]
  %v172 = vld [vmem:[%s0 + $0x22c] sm:$0xf]
  %v173 = vld [vmem:[%s0 + $0x230] sm:$0xf]
  %v174 = vld [vmem:[%s0 + $0x234] sm:$0xf]
  %v175 = vld [vmem:[%s0 + $0x238] sm:$0xf]
  %v176 = vld [vmem:[%s0 + $0x23c] sm:$0xf]
  %v177 = vld [vmem:[%s1] sm:$0xf]
  %v178 = vld [vmem:[%s1 + $0x4] sm:$0xf]
  %v179 = vld [vmem:[%s1 + $0x8] sm:$0xf]
  %v180 = vld [vmem:[%s1 + $0xc] sm:$0x1]
  %v325 = vunpack.c.l.b16 %v33
  %v326 = vunpack.c.l.b16 %v34
  %v327 = vunpack.c.l.b16 %v35
  %v328 = vunpack.c.l.b16 %v36
  %v329 = vunpack.c.l.b16 %v37
  %v330 = vunpack.c.l.b16 %v38
  %v331 = vunpack.c.l.b16 %v39
  %v332 = vunpack.c.l.b16 %v40
  %v333 = vunpack.c.l.b16 %v41
  %v334 = vunpack.c.l.b16 %v42
  %v335 = vunpack.c.l.b16 %v43
  %v336 = vunpack.c.l.b16 %v44
  %v337 = vunpack.c.l.b16 %v45
  %v338 = vunpack.c.l.b16 %v46
  %v339 = vunpack.c.l.b16 %v47
  %v340 = vunpack.c.l.b16 %v48
  %v341 = vunpack.c.l.b16 %v49
  %v342 = vunpack.c.l.b16 %v50
  %v343 = vunpack.c.l.b16 %v51
  %v344 = vunpack.c.l.b16 %v52
  %v345 = vunpack.c.l.b16 %v53
  %v346 = vunpack.c.l.b16 %v54
  %v347 = vunpack.c.l.b16 %v55
  %v348 = vunpack.c.l.b16 %v56
  %v349 = vunpack.c.l.b16 %v57
  %v350 = vunpack.c.l.b16 %v58
  %v351 = vunpack.c.l.b16 %v59
  %v352 = vunpack.c.l.b16 %v60
  %v353 = vunpack.c.l.b16 %v61
  %v354 = vunpack.c.l.b16 %v62
  %v355 = vunpack.c.l.b16 %v63
  %v356 = vunpack.c.l.b16 %v64
  %v357 = vunpack.c.l.b16 %v65
  %v358 = vunpack.c.l.b16 %v66
  %v359 = vunpack.c.l.b16 %v67
  %v360 = vunpack.c.l.b16 %v68
  %v361 = vunpack.c.l.b16 %v69
  %v362 = vunpack.c.l.b16 %v70
  %v363 = vunpack.c.l.b16 %v71
  %v364 = vunpack.c.l.b16 %v72
  %v365 = vunpack.c.l.b16 %v73
  %v366 = vunpack.c.l.b16 %v74
  %v367 = vunpack.c.l.b16 %v75
  %v368 = vunpack.c.l.b16 %v76
  %v369 = vunpack.c.l.b16 %v77
  %v370 = vunpack.c.l.b16 %v78
  %v371 = vunpack.c.l.b16 %v79
  %v372 = vunpack.c.l.b16 %v80
  %v373 = vunpack.c.l.b16 %v81
  %v374 = vunpack.c.l.b16 %v82
  %v375 = vunpack.c.l.b16 %v83
  %v376 = vunpack.c.l.b16 %v84
  %v377 = vunpack.c.l.b16 %v85
  %v378 = vunpack.c.l.b16 %v86
  %v379 = vunpack.c.l.b16 %v87
  %v380 = vunpack.c.l.b16 %v88
  %v381 = vunpack.c.l.b16 %v89
  %v382 = vunpack.c.l.b16 %v90
  %v383 = vunpack.c.l.b16 %v91
  %v384 = vunpack.c.l.b16 %v92
  %v385 = vunpack.c.l.b16 %v93
  %v386 = vunpack.c.l.b16 %v94
  %v387 = vunpack.c.l.b16 %v95
  %v388 = vunpack.c.l.b16 %v96
  %v389 = vunpack.c.l.b16 %v97
  %v390 = vunpack.c.l.b16 %v98
  %v391 = vunpack.c.l.b16 %v99
  %v392 = vunpack.c.l.b16 %v100
  %v393 = vunpack.c.l.b16 %v101
  %v394 = vunpack.c.l.b16 %v102
  %v395 = vunpack.c.l.b16 %v103
  %v396 = vunpack.c.l.b16 %v104
  %v397 = vunpack.c.l.b16 %v105
  %v398 = vunpack.c.l.b16 %v106
  %v399 = vunpack.c.l.b16 %v107
  %v400 = vunpack.c.l.b16 %v108
  %v401 = vunpack.c.l.b16 %v109
  %v402 = vunpack.c.l.b16 %v110
  %v403 = vunpack.c.l.b16 %v111
  %v404 = vunpack.c.l.b16 %v112
  %v405 = vunpack.c.l.b16 %v113
  %v406 = vunpack.c.l.b16 %v114
  %v407 = vunpack.c.l.b16 %v115
  %v408 = vunpack.c.l.b16 %v116
  %v409 = vunpack.c.l.b16 %v117
  %v410 = vunpack.c.l.b16 %v118
  %v411 = vunpack.c.l.b16 %v119
  %v412 = vunpack.c.l.b16 %v120
  %v413 = vunpack.c.l.b16 %v121
  %v414 = vunpack.c.l.b16 %v122
  %v415 = vunpack.c.l.b16 %v123
  %v416 = vunpack.c.l.b16 %v124
  %v417 = vunpack.c.l.b16 %v125
  %v418 = vunpack.c.l.b16 %v126
  %v419 = vunpack.c.l.b16 %v127
  %v420 = vunpack.c.l.b16 %v128
  %v421 = vunpack.c.l.b16 %v129
  %v422 = vunpack.c.l.b16 %v130
  %v423 = vunpack.c.l.b16 %v131
  %v424 = vunpack.c.l.b16 %v132
  %v425 = vunpack.c.l.b16 %v133
  %v426 = vunpack.c.l.b16 %v134
  %v427 = vunpack.c.l.b16 %v135
  %v428 = vunpack.c.l.b16 %v136
  %v429 = vunpack.c.l.b16 %v137
  %v430 = vunpack.c.l.b16 %v138
  %v431 = vunpack.c.l.b16 %v139
  %v432 = vunpack.c.l.b16 %v140
  %v433 = vunpack.c.l.b16 %v141
  %v434 = vunpack.c.l.b16 %v142
  %v435 = vunpack.c.l.b16 %v143
  %v436 = vunpack.c.l.b16 %v144
  %v437 = vunpack.c.l.b16 %v145
  %v438 = vunpack.c.l.b16 %v146
  %v439 = vunpack.c.l.b16 %v147
  %v440 = vunpack.c.l.b16 %v148
  %v441 = vunpack.c.l.b16 %v149
  %v442 = vunpack.c.l.b16 %v150
  %v443 = vunpack.c.l.b16 %v151
  %v444 = vunpack.c.l.b16 %v152
  %v445 = vunpack.c.l.b16 %v153
  %v446 = vunpack.c.l.b16 %v154
  %v447 = vunpack.c.l.b16 %v155
  %v448 = vunpack.c.l.b16 %v156
  %v449 = vunpack.c.l.b16 %v157
  %v450 = vunpack.c.l.b16 %v158
  %v451 = vunpack.c.l.b16 %v159
  %v452 = vunpack.c.l.b16 %v160
  %v453 = vunpack.c.l.b16 %v161
  %v454 = vunpack.c.l.b16 %v162
  %v455 = vunpack.c.l.b16 %v163
  %v456 = vunpack.c.l.b16 %v164
  %v457 = vunpack.c.l.b16 %v165
  %v458 = vunpack.c.l.b16 %v166
  %v459 = vunpack.c.l.b16 %v167
  %v460 = vunpack.c.l.b16 %v168
  %v461 = vunpack.c.l.b16 %v169
  %v462 = vunpack.c.l.b16 %v170
  %v463 = vunpack.c.l.b16 %v171
  %v464 = vunpack.c.l.b16 %v172
  %v465 = vunpack.c.l.b16 %v173
  %v466 = vunpack.c.l.b16 %v174
  %v467 = vunpack.c.l.b16 %v175
  %v468 = vunpack.c.l.b16 %v176
  %v469 = vpack.c.b16 %v326, %v325
  %v470 = vpack.c.b16 %v328, %v327
  %v471 = vpack.c.b16 %v330, %v329
  %v472 = vpack.c.b16 %v332, %v331
  %v473 = vpack.c.b16 %v334, %v333
  %v474 = vpack.c.b16 %v336, %v335
  %v475 = vpack.c.b16 %v338, %v337
  %v476 = vpack.c.b16 %v340, %v339
  %v477 = vpack.c.b16 %v342, %v341
  %v478 = vpack.c.b16 %v344, %v343
  %v479 = vpack.c.b16 %v346, %v345
  %v480 = vpack.c.b16 %v348, %v347
  %v481 = vpack.c.b16 %v350, %v349
  %v482 = vpack.c.b16 %v352, %v351
  %v483 = vpack.c.b16 %v354, %v353
  %v484 = vpack.c.b16 %v356, %v355
  %v485 = vpack.c.b16 %v358, %v357
  %v486 = vpack.c.b16 %v360, %v359
  %v487 = vpack.c.b16 %v362, %v361
  %v488 = vpack.c.b16 %v364, %v363
  %v489 = vpack.c.b16 %v366, %v365
  %v490 = vpack.c.b16 %v368, %v367
  %v491 = vpack.c.b16 %v370, %v369
  %v492 = vpack.c.b16 %v372, %v371
  %v493 = vpack.c.b16 %v374, %v373
  %v494 = vpack.c.b16 %v376, %v375
  %v495 = vpack.c.b16 %v378, %v377
  %v496 = vpack.c.b16 %v380, %v379
  %v497 = vpack.c.b16 %v382, %v381
  %v498 = vpack.c.b16 %v384, %v383
  %v499 = vpack.c.b16 %v386, %v385
  %v500 = vpack.c.b16 %v388, %v387
  %v501 = vpack.c.b16 %v390, %v389
  %v502 = vpack.c.b16 %v392, %v391
  %v503 = vpack.c.b16 %v394, %v393
  %v504 = vpack.c.b16 %v396, %v395
  %v505 = vpack.c.b16 %v398, %v397
  %v506 = vpack.c.b16 %v400, %v399
  %v507 = vpack.c.b16 %v402, %v401
  %v508 = vpack.c.b16 %v404, %v403
  %v509 = vpack.c.b16 %v406, %v405
  %v510 = vpack.c.b16 %v408, %v407
  %v511 = vpack.c.b16 %v410, %v409
  %v512 = vpack.c.b16 %v412, %v411
  %v513 = vpack.c.b16 %v414, %v413
  %v514 = vpack.c.b16 %v416, %v415
  %v515 = vpack.c.b16 %v418, %v417
  %v516 = vpack.c.b16 %v420, %v419
  %v517 = vpack.c.b16 %v422, %v421
  %v518 = vpack.c.b16 %v424, %v423
  %v519 = vpack.c.b16 %v426, %v425
  %v520 = vpack.c.b16 %v428, %v427
  %v521 = vpack.c.b16 %v430, %v429
  %v522 = vpack.c.b16 %v432, %v431
  %v523 = vpack.c.b16 %v434, %v433
  %v524 = vpack.c.b16 %v436, %v435
  %v525 = vpack.c.b16 %v438, %v437
  %v526 = vpack.c.b16 %v440, %v439
  %v527 = vpack.c.b16 %v442, %v441
  %v528 = vpack.c.b16 %v444, %v443
  %v529 = vpack.c.b16 %v446, %v445
  %v530 = vpack.c.b16 %v448, %v447
  %v531 = vpack.c.b16 %v450, %v449
  %v532 = vpack.c.b16 %v452, %v451
  %v533 = vpack.c.b16 %v454, %v453
  %v534 = vpack.c.b16 %v456, %v455
  %v535 = vpack.c.b16 %v458, %v457
  %v536 = vpack.c.b16 %v460, %v459
  %v537 = vpack.c.b16 %v462, %v461
  %v538 = vpack.c.b16 %v464, %v463
  %v539 = vpack.c.b16 %v466, %v465
  %v540 = vpack.c.b16 %v468, %v467
  %v545 = vunpack.c.l.b16 %v177
  %v546 = vunpack.c.l.b16 %v178
  %v547 = vunpack.c.l.b16 %v179
  %v548 = vunpack.c.l.b16 %v180
  %v549 = vpack.c.b16 %v546, %v545
  %v550 = vpack.c.b16 %v548, %v547
  %vm552 = vcmask 203776
  %v554 = vsel %vm552, %v469, 0
  %v557 = vsel %vm552, %v470, 0
  %v560 = vsel %vm552, %v471, 0
  %v563 = vsel %vm552, %v472, 0
  %v566 = vsel %vm552, %v473, 0
  %v569 = vsel %vm552, %v474, 0
  %v572 = vsel %vm552, %v475, 0
  %v575 = vsel %vm552, %v476, 0
  %v578 = vsel %vm552, %v477, 0
  %v581 = vsel %vm552, %v478, 0
  %v584 = vsel %vm552, %v479, 0
  %v587 = vsel %vm552, %v480, 0
  %v590 = vsel %vm552, %v481, 0
  %v593 = vsel %vm552, %v482, 0
  %v596 = vsel %vm552, %v483, 0
  %v599 = vsel %vm552, %v484, 0
  %v602 = vsel %vm552, %v485, 0
  %v605 = vsel %vm552, %v486, 0
  %v608 = vsel %vm552, %v487, 0
  %v611 = vsel %vm552, %v488, 0
  %v614 = vsel %vm552, %v489, 0
  %v617 = vsel %vm552, %v490, 0
  %v620 = vsel %vm552, %v491, 0
  %v623 = vsel %vm552, %v492, 0
  %v626 = vsel %vm552, %v493, 0
  %v629 = vsel %vm552, %v494, 0
  %v632 = vsel %vm552, %v495, 0
  %v635 = vsel %vm552, %v496, 0
  %v638 = vsel %vm552, %v497, 0
  %v641 = vsel %vm552, %v498, 0
  %v644 = vsel %vm552, %v499, 0
  %v647 = vsel %vm552, %v500, 0
  %v650 = vsel %vm552, %v501, 0
  %v653 = vsel %vm552, %v502, 0
  %v656 = vsel %vm552, %v503, 0
  %v659 = vsel %vm552, %v504, 0
  %v662 = vsel %vm552, %v505, 0
  %v665 = vsel %vm552, %v506, 0
  %v668 = vsel %vm552, %v507, 0
  %v671 = vsel %vm552, %v508, 0
  %v674 = vsel %vm552, %v509, 0
  %v677 = vsel %vm552, %v510, 0
  %v680 = vsel %vm552, %v511, 0
  %v683 = vsel %vm552, %v512, 0
  %v686 = vsel %vm552, %v513, 0
  %v689 = vsel %vm552, %v514, 0
  %v692 = vsel %vm552, %v515, 0
  %v695 = vsel %vm552, %v516, 0
  %v698 = vsel %vm552, %v517, 0
  %v701 = vsel %vm552, %v518, 0
  %v704 = vsel %vm552, %v519, 0
  %v707 = vsel %vm552, %v520, 0
  %v710 = vsel %vm552, %v521, 0
  %v713 = vsel %vm552, %v522, 0
  %v716 = vsel %vm552, %v523, 0
  %v719 = vsel %vm552, %v524, 0
  %v722 = vsel %vm552, %v525, 0
  %v725 = vsel %vm552, %v526, 0
  %v728 = vsel %vm552, %v527, 0
  %v731 = vsel %vm552, %v528, 0
  %v734 = vsel %vm552, %v529, 0
  %v737 = vsel %vm552, %v530, 0
  %v740 = vsel %vm552, %v531, 0
  %v743 = vsel %vm552, %v532, 0
  %v746 = vsel %vm552, %v533, 0
  %v749 = vsel %vm552, %v534, 0
  %v752 = vsel %vm552, %v535, 0
  %v755 = vsel %vm552, %v536, 0
  %v758 = vsel %vm552, %v537, 0
  %v761 = vsel %vm552, %v538, 0
  %v764 = vsel %vm552, %v539, 0
  %v767 = vsel %vm552, %v540, 0
  %vm769 = vcmask 1043456
  %vm770 = vcmask 1044480
  %v771 = vsel %vm769, 4294967295, 65535
  %v772 = vsel %vm770, %v771, 0
  %v774 = vand.u32 %v550, %v772
  %776 = vmatprep.subr.bf16.mxu0 0
  %777 = vmatpush1.bf16.msra.mxu0 0
  %778 = vmatprep.subr.bf16.mxu0 0
  %779 = vmatpush1.bf16.msra.mxu0 0
  %780 = vmatprep.subr.bf16.mxu0 0
  %781 = vmatpush1.bf16.msra.mxu0 0
  %782 = vmatprep.subr.bf16.mxu0 0
  %783 = vmatpush1.bf16.msra.mxu0 0
  %784 = vmatprep.subr.bf16.mxu0 0
  %785 = vmatpush1.bf16.msra.mxu0 0
  %786 = vmatprep.subr.bf16.mxu0 0
  %787 = vmatpush1.bf16.msra.mxu0 0
  %788 = vmatprep.subr.bf16.mxu0 0
  %789 = vmatpush1.bf16.msra.mxu0 %v774
  %790 = vmatprep.subr.bf16.mxu0 0
  %791 = vmatpush1.bf16.msra.mxu0 %v549
  %792 = vmatprep.subr.bf16.mxu0 0
  %793 = vmatpush2.bf16.msra.mxu0 0
  %794 = vmatprep.subr.bf16.mxu0 0
  %795 = vmatpush2.bf16.msra.mxu0 0
  %796 = vmatprep.subr.bf16.mxu0 0
  %797 = vmatpush2.bf16.msra.mxu0 0
  %798 = vmatprep.subr.bf16.mxu0 0
  %799 = vmatpush2.bf16.msra.mxu0 0
  %800 = vmatprep.subr.bf16.mxu0 0
  %801 = vmatpush2.bf16.msra.mxu0 0
  %802 = vmatprep.subr.bf16.mxu0 0
  %803 = vmatpush2.bf16.msra.mxu0 0
  %804 = vmatprep.subr.bf16.mxu0 0
  %805 = vmatpush2.bf16.msra.mxu0 0
  %806 = vmatprep.subr.bf16.mxu0 0
  %807 = vmatpush2.bf16.msra.mxu0 0
  %808 = vmatprep.mubr.bf16.mxu0 0
  %809 = vmatmul.mubr.bf16.gmra.mxu0 %v554
  %v810 = vpop.f32.mrf.mxu0
  %v811 = vadd.f32 0.0, %v810
  %v812 = vpop.f32.mrf.mxu0
  %v813 = vpop.f32.mrf.mxu0
  %v814 = vadd.f32 0.0, %v813
  %v815 = vpop.f32.mrf.mxu0
  %816 = vmatprep.mubr.bf16.mxu0 0
  %817 = vmatmul.mubr.bf16.gmra.mxu0 %v557
  %v818 = vpop.f32.mrf.mxu0
  %v819 = vadd.f32 0.0, %v818
  %v820 = vpop.f32.mrf.mxu0
  %v821 = vpop.f32.mrf.mxu0
  %v822 = vadd.f32 0.0, %v821
  %v823 = vpop.f32.mrf.mxu0
  %824 = vmatprep.mubr.bf16.mxu0 0
  %825 = vmatmul.mubr.bf16.gmra.mxu0 %v560
  %v826 = vpop.f32.mrf.mxu0
  %v827 = vadd.f32 0.0, %v826
  %v828 = vpop.f32.mrf.mxu0
  %v829 = vpop.f32.mrf.mxu0
  %v830 = vadd.f32 0.0, %v829
  %v831 = vpop.f32.mrf.mxu0
  %832 = vmatprep.mubr.bf16.mxu0 0
  %833 = vmatmul.mubr.bf16.gmra.mxu0 %v563
  %v834 = vpop.f32.mrf.mxu0
  %v835 = vadd.f32 0.0, %v834
  %v836 = vpop.f32.mrf.mxu0
  %v837 = vpop.f32.mrf.mxu0
  %v838 = vadd.f32 0.0, %v837
  %v839 = vpop.f32.mrf.mxu0
  %840 = vmatprep.mubr.bf16.mxu0 0
  %841 = vmatmul.mubr.bf16.gmra.mxu0 %v566
  %v842 = vpop.f32.mrf.mxu0
  %v843 = vadd.f32 0.0, %v842
  %v844 = vpop.f32.mrf.mxu0
  %v845 = vpop.f32.mrf.mxu0
  %v846 = vadd.f32 0.0, %v845
  %v847 = vpop.f32.mrf.mxu0
  %848 = vmatprep.mubr.bf16.mxu0 0
  %849 = vmatmul.mubr.bf16.gmra.mxu0 %v569
  %v850 = vpop.f32.mrf.mxu0
  %v851 = vadd.f32 0.0, %v850
  %v852 = vpop.f32.mrf.mxu0
  %v853 = vpop.f32.mrf.mxu0
  %v854 = vadd.f32 0.0, %v853
  %v855 = vpop.f32.mrf.mxu0
  %856 = vmatprep.mubr.bf16.mxu0 0
  %857 = vmatmul.mubr.bf16.gmra.mxu0 %v572
  %v858 = vpop.f32.mrf.mxu0
  %v859 = vadd.f32 0.0, %v858
  %v860 = vpop.f32.mrf.mxu0
  %v861 = vpop.f32.mrf.mxu0
  %v862 = vadd.f32 0.0, %v861
  %v863 = vpop.f32.mrf.mxu0
  %864 = vmatprep.mubr.bf16.mxu0 0
  %865 = vmatmul.mubr.bf16.gmra.mxu0 %v575
  %v866 = vpop.f32.mrf.mxu0
  %v867 = vadd.f32 0.0, %v866
  %v868 = vpop.f32.mrf.mxu0
  %v869 = vpop.f32.mrf.mxu0
  %v870 = vadd.f32 0.0, %v869
  %v871 = vpop.f32.mrf.mxu0
  %872 = vmatprep.mubr.bf16.mxu0 0
  %873 = vmatmul.mubr.bf16.gmra.mxu0 %v578
  %v874 = vpop.f32.mrf.mxu0
  %v875 = vadd.f32 0.0, %v874
  %v876 = vpop.f32.mrf.mxu0
  %v877 = vpop.f32.mrf.mxu0
  %v878 = vadd.f32 0.0, %v877
  %v879 = vpop.f32.mrf.mxu0
  %880 = vmatprep.mubr.bf16.mxu0 0
  %881 = vmatmul.mubr.bf16.gmra.mxu0 %v581
  %v882 = vpop.f32.mrf.mxu0
  %v883 = vadd.f32 0.0, %v882
  %v884 = vpop.f32.mrf.mxu0
  %v885 = vpop.f32.mrf.mxu0
  %v886 = vadd.f32 0.0, %v885
  %v887 = vpop.f32.mrf.mxu0
  %888 = vmatprep.mubr.bf16.mxu0 0
  %889 = vmatmul.mubr.bf16.gmra.mxu0 %v584
  %v890 = vpop.f32.mrf.mxu0
  %v891 = vadd.f32 0.0, %v890
  %v892 = vpop.f32.mrf.mxu0
  %v893 = vpop.f32.mrf.mxu0
  %v894 = vadd.f32 0.0, %v893
  %v895 = vpop.f32.mrf.mxu0
  %896 = vmatprep.mubr.bf16.mxu0 0
  %897 = vmatmul.mubr.bf16.gmra.mxu0 %v587
  %v898 = vpop.f32.mrf.mxu0
  %v899 = vadd.f32 0.0, %v898
  %v900 = vpop.f32.mrf.mxu0
  %v901 = vpop.f32.mrf.mxu0
  %v902 = vadd.f32 0.0, %v901
  %v903 = vpop.f32.mrf.mxu0
  %904 = vmatprep.mubr.bf16.mxu0 0
  %905 = vmatmul.mubr.bf16.gmra.mxu0 %v590
  %v906 = vpop.f32.mrf.mxu0
  %v907 = vadd.f32 0.0, %v906
  %v908 = vpop.f32.mrf.mxu0
  %v909 = vpop.f32.mrf.mxu0
  %v910 = vadd.f32 0.0, %v909
  %v911 = vpop.f32.mrf.mxu0
  %912 = vmatprep.mubr.bf16.mxu0 0
  %913 = vmatmul.mubr.bf16.gmra.mxu0 %v593
  %v914 = vpop.f32.mrf.mxu0
  %v915 = vadd.f32 0.0, %v914
  %v916 = vpop.f32.mrf.mxu0
  %v917 = vpop.f32.mrf.mxu0
  %v918 = vadd.f32 0.0, %v917
  %v919 = vpop.f32.mrf.mxu0
  %920 = vmatprep.mubr.bf16.mxu0 0
  %921 = vmatmul.mubr.bf16.gmra.mxu0 %v596
  %v922 = vpop.f32.mrf.mxu0
  %v923 = vadd.f32 0.0, %v922
  %v924 = vpop.f32.mrf.mxu0
  %v925 = vpop.f32.mrf.mxu0
  %v926 = vadd.f32 0.0, %v925
  %v927 = vpop.f32.mrf.mxu0
  %928 = vmatprep.mubr.bf16.mxu0 0
  %929 = vmatmul.mubr.bf16.gmra.mxu0 %v599
  %v930 = vpop.f32.mrf.mxu0
  %v931 = vadd.f32 0.0, %v930
  %v932 = vpop.f32.mrf.mxu0
  %v933 = vpop.f32.mrf.mxu0
  %v934 = vadd.f32 0.0, %v933
  %v935 = vpop.f32.mrf.mxu0
  %936 = vmatprep.mubr.bf16.mxu0 0
  %937 = vmatmul.mubr.bf16.gmra.mxu0 %v602
  %v938 = vpop.f32.mrf.mxu0
  %v939 = vadd.f32 0.0, %v938
  %v940 = vpop.f32.mrf.mxu0
  %v941 = vpop.f32.mrf.mxu0
  %v942 = vadd.f32 0.0, %v941
  %v943 = vpop.f32.mrf.mxu0
  %944 = vmatprep.mubr.bf16.mxu0 0
  %945 = vmatmul.mubr.bf16.gmra.mxu0 %v605
  %v946 = vpop.f32.mrf.mxu0
  %v947 = vadd.f32 0.0, %v946
  %v948 = vpop.f32.mrf.mxu0
  %v949 = vpop.f32.mrf.mxu0
  %v950 = vadd.f32 0.0, %v949
  %v951 = vpop.f32.mrf.mxu0
  %952 = vmatprep.mubr.bf16.mxu0 0
  %953 = vmatmul.mubr.bf16.gmra.mxu0 %v608
  %v954 = vpop.f32.mrf.mxu0
  %v955 = vadd.f32 0.0, %v954
  %v956 = vpop.f32.mrf.mxu0
  %v957 = vpop.f32.mrf.mxu0
  %v958 = vadd.f32 0.0, %v957
  %v959 = vpop.f32.mrf.mxu0
  %960 = vmatprep.mubr.bf16.mxu0 0
  %961 = vmatmul.mubr.bf16.gmra.mxu0 %v611
  %v962 = vpop.f32.mrf.mxu0
  %v963 = vadd.f32 0.0, %v962
  %v964 = vpop.f32.mrf.mxu0
  %v965 = vpop.f32.mrf.mxu0
  %v966 = vadd.f32 0.0, %v965
  %v967 = vpop.f32.mrf.mxu0
  %968 = vmatprep.mubr.bf16.mxu0 0
  %969 = vmatmul.mubr.bf16.gmra.mxu0 %v614
  %v970 = vpop.f32.mrf.mxu0
  %v971 = vadd.f32 0.0, %v970
  %v972 = vpop.f32.mrf.mxu0
  %v973 = vpop.f32.mrf.mxu0
  %v974 = vadd.f32 0.0, %v973
  %v975 = vpop.f32.mrf.mxu0
  %976 = vmatprep.mubr.bf16.mxu0 0
  %977 = vmatmul.mubr.bf16.gmra.mxu0 %v617
  %v978 = vpop.f32.mrf.mxu0
  %v979 = vadd.f32 0.0, %v978
  %v980 = vpop.f32.mrf.mxu0
  %v981 = vpop.f32.mrf.mxu0
  %v982 = vadd.f32 0.0, %v981
  %v983 = vpop.f32.mrf.mxu0
  %984 = vmatprep.mubr.bf16.mxu0 0
  %985 = vmatmul.mubr.bf16.gmra.mxu0 %v620
  %v986 = vpop.f32.mrf.mxu0
  %v987 = vadd.f32 0.0, %v986
  %v988 = vpop.f32.mrf.mxu0
  %v989 = vpop.f32.mrf.mxu0
  %v990 = vadd.f32 0.0, %v989
  %v991 = vpop.f32.mrf.mxu0
  %992 = vmatprep.mubr.bf16.mxu0 0
  %993 = vmatmul.mubr.bf16.gmra.mxu0 %v623
  %v994 = vpop.f32.mrf.mxu0
  %v995 = vadd.f32 0.0, %v994
  %v996 = vpop.f32.mrf.mxu0
  %v997 = vpop.f32.mrf.mxu0
  %v998 = vadd.f32 0.0, %v997
  %v999 = vpop.f32.mrf.mxu0
  %1000 = vmatprep.mubr.bf16.mxu0 0
  %1001 = vmatmul.mubr.bf16.gmra.mxu0 %v626
  %v1002 = vpop.f32.mrf.mxu0
  %v1003 = vadd.f32 0.0, %v1002
  %v1004 = vpop.f32.mrf.mxu0
  %v1005 = vpop.f32.mrf.mxu0
  %v1006 = vadd.f32 0.0, %v1005
  %v1007 = vpop.f32.mrf.mxu0
  %1008 = vmatprep.mubr.bf16.mxu0 0
  %1009 = vmatmul.mubr.bf16.gmra.mxu0 %v629
  %v1010 = vpop.f32.mrf.mxu0
  %v1011 = vadd.f32 0.0, %v1010
  %v1012 = vpop.f32.mrf.mxu0
  %v1013 = vpop.f32.mrf.mxu0
  %v1014 = vadd.f32 0.0, %v1013
  %v1015 = vpop.f32.mrf.mxu0
  %1016 = vmatprep.mubr.bf16.mxu0 0
  %1017 = vmatmul.mubr.bf16.gmra.mxu0 %v632
  %v1018 = vpop.f32.mrf.mxu0
  %v1019 = vadd.f32 0.0, %v1018
  %v1020 = vpop.f32.mrf.mxu0
  %v1021 = vpop.f32.mrf.mxu0
  %v1022 = vadd.f32 0.0, %v1021
  %v1023 = vpop.f32.mrf.mxu0
  %1024 = vmatprep.mubr.bf16.mxu0 0
  %1025 = vmatmul.mubr.bf16.gmra.mxu0 %v635
  %v1026 = vpop.f32.mrf.mxu0
  %v1027 = vadd.f32 0.0, %v1026
  %v1028 = vpop.f32.mrf.mxu0
  %v1029 = vpop.f32.mrf.mxu0
  %v1030 = vadd.f32 0.0, %v1029
  %v1031 = vpop.f32.mrf.mxu0
  %1032 = vmatprep.mubr.bf16.mxu0 0
  %1033 = vmatmul.mubr.bf16.gmra.mxu0 %v638
  %v1034 = vpop.f32.mrf.mxu0
  %v1035 = vadd.f32 0.0, %v1034
  %v1036 = vpop.f32.mrf.mxu0
  %v1037 = vpop.f32.mrf.mxu0
  %v1038 = vadd.f32 0.0, %v1037
  %v1039 = vpop.f32.mrf.mxu0
  %1040 = vmatprep.mubr.bf16.mxu0 0
  %1041 = vmatmul.mubr.bf16.gmra.mxu0 %v641
  %v1042 = vpop.f32.mrf.mxu0
  %v1043 = vadd.f32 0.0, %v1042
  %v1044 = vpop.f32.mrf.mxu0
  %v1045 = vpop.f32.mrf.mxu0
  %v1046 = vadd.f32 0.0, %v1045
  %v1047 = vpop.f32.mrf.mxu0
  %1048 = vmatprep.mubr.bf16.mxu0 0
  %1049 = vmatmul.mubr.bf16.gmra.mxu0 %v644
  %v1050 = vpop.f32.mrf.mxu0
  %v1051 = vadd.f32 0.0, %v1050
  %v1052 = vpop.f32.mrf.mxu0
  %v1053 = vpop.f32.mrf.mxu0
  %v1054 = vadd.f32 0.0, %v1053
  %v1055 = vpop.f32.mrf.mxu0
  %1056 = vmatprep.mubr.bf16.mxu0 0
  %1057 = vmatmul.mubr.bf16.gmra.mxu0 %v647
  %v1058 = vpop.f32.mrf.mxu0
  %v1059 = vadd.f32 0.0, %v1058
  %v1060 = vpop.f32.mrf.mxu0
  %v1061 = vpop.f32.mrf.mxu0
  %v1062 = vadd.f32 0.0, %v1061
  %v1063 = vpop.f32.mrf.mxu0
  %1064 = vmatprep.mubr.bf16.mxu0 0
  %1065 = vmatmul.mubr.bf16.gmra.mxu0 %v650
  %v1066 = vpop.f32.mrf.mxu0
  %v1067 = vadd.f32 0.0, %v1066
  %v1068 = vpop.f32.mrf.mxu0
  %v1069 = vpop.f32.mrf.mxu0
  %v1070 = vadd.f32 0.0, %v1069
  %v1071 = vpop.f32.mrf.mxu0
  %1072 = vmatprep.mubr.bf16.mxu0 0
  %1073 = vmatmul.mubr.bf16.gmra.mxu0 %v653
  %v1074 = vpop.f32.mrf.mxu0
  %v1075 = vadd.f32 0.0, %v1074
  %v1076 = vpop.f32.mrf.mxu0
  %v1077 = vpop.f32.mrf.mxu0
  %v1078 = vadd.f32 0.0, %v1077
  %v1079 = vpop.f32.mrf.mxu0
  %1080 = vmatprep.mubr.bf16.mxu0 0
  %1081 = vmatmul.mubr.bf16.gmra.mxu0 %v656
  %v1082 = vpop.f32.mrf.mxu0
  %v1083 = vadd.f32 0.0, %v1082
  %v1084 = vpop.f32.mrf.mxu0
  %v1085 = vpop.f32.mrf.mxu0
  %v1086 = vadd.f32 0.0, %v1085
  %v1087 = vpop.f32.mrf.mxu0
  %1088 = vmatprep.mubr.bf16.mxu0 0
  %1089 = vmatmul.mubr.bf16.gmra.mxu0 %v659
  %v1090 = vpop.f32.mrf.mxu0
  %v1091 = vadd.f32 0.0, %v1090
  %v1092 = vpop.f32.mrf.mxu0
  %v1093 = vpop.f32.mrf.mxu0
  %v1094 = vadd.f32 0.0, %v1093
  %v1095 = vpop.f32.mrf.mxu0
  %1096 = vmatprep.mubr.bf16.mxu0 0
  %1097 = vmatmul.mubr.bf16.gmra.mxu0 %v662
  %v1098 = vpop.f32.mrf.mxu0
  %v1099 = vadd.f32 0.0, %v1098
  %v1100 = vpop.f32.mrf.mxu0
  %v1101 = vpop.f32.mrf.mxu0
  %v1102 = vadd.f32 0.0, %v1101
  %v1103 = vpop.f32.mrf.mxu0
  %1104 = vmatprep.mubr.bf16.mxu0 0
  %1105 = vmatmul.mubr.bf16.gmra.mxu0 %v665
  %v1106 = vpop.f32.mrf.mxu0
  %v1107 = vadd.f32 0.0, %v1106
  %v1108 = vpop.f32.mrf.mxu0
  %v1109 = vpop.f32.mrf.mxu0
  %v1110 = vadd.f32 0.0, %v1109
  %v1111 = vpop.f32.mrf.mxu0
  %1112 = vmatprep.mubr.bf16.mxu0 0
  %1113 = vmatmul.mubr.bf16.gmra.mxu0 %v668
  %v1114 = vpop.f32.mrf.mxu0
  %v1115 = vadd.f32 0.0, %v1114
  %v1116 = vpop.f32.mrf.mxu0
  %v1117 = vpop.f32.mrf.mxu0
  %v1118 = vadd.f32 0.0, %v1117
  %v1119 = vpop.f32.mrf.mxu0
  %1120 = vmatprep.mubr.bf16.mxu0 0
  %1121 = vmatmul.mubr.bf16.gmra.mxu0 %v671
  %v1122 = vpop.f32.mrf.mxu0
  %v1123 = vadd.f32 0.0, %v1122
  %v1124 = vpop.f32.mrf.mxu0
  %v1125 = vpop.f32.mrf.mxu0
  %v1126 = vadd.f32 0.0, %v1125
  %v1127 = vpop.f32.mrf.mxu0
  %1128 = vmatprep.mubr.bf16.mxu0 0
  %1129 = vmatmul.mubr.bf16.gmra.mxu0 %v674
  %v1130 = vpop.f32.mrf.mxu0
  %v1131 = vadd.f32 0.0, %v1130
  %v1132 = vpop.f32.mrf.mxu0
  %v1133 = vpop.f32.mrf.mxu0
  %v1134 = vadd.f32 0.0, %v1133
  %v1135 = vpop.f32.mrf.mxu0
  %1136 = vmatprep.mubr.bf16.mxu0 0
  %1137 = vmatmul.mubr.bf16.gmra.mxu0 %v677
  %v1138 = vpop.f32.mrf.mxu0
  %v1139 = vadd.f32 0.0, %v1138
  %v1140 = vpop.f32.mrf.mxu0
  %v1141 = vpop.f32.mrf.mxu0
  %v1142 = vadd.f32 0.0, %v1141
  %v1143 = vpop.f32.mrf.mxu0
  %1144 = vmatprep.mubr.bf16.mxu0 0
  %1145 = vmatmul.mubr.bf16.gmra.mxu0 %v680
  %v1146 = vpop.f32.mrf.mxu0
  %v1147 = vadd.f32 0.0, %v1146
  %v1148 = vpop.f32.mrf.mxu0
  %v1149 = vpop.f32.mrf.mxu0
  %v1150 = vadd.f32 0.0, %v1149
  %v1151 = vpop.f32.mrf.mxu0
  %1152 = vmatprep.mubr.bf16.mxu0 0
  %1153 = vmatmul.mubr.bf16.gmra.mxu0 %v683
  %v1154 = vpop.f32.mrf.mxu0
  %v1155 = vadd.f32 0.0, %v1154
  %v1156 = vpop.f32.mrf.mxu0
  %v1157 = vpop.f32.mrf.mxu0
  %v1158 = vadd.f32 0.0, %v1157
  %v1159 = vpop.f32.mrf.mxu0
  %1160 = vmatprep.mubr.bf16.mxu0 0
  %1161 = vmatmul.mubr.bf16.gmra.mxu0 %v686
  %v1162 = vpop.f32.mrf.mxu0
  %v1163 = vadd.f32 0.0, %v1162
  %v1164 = vpop.f32.mrf.mxu0
  %v1165 = vpop.f32.mrf.mxu0
  %v1166 = vadd.f32 0.0, %v1165
  %v1167 = vpop.f32.mrf.mxu0
  %1168 = vmatprep.mubr.bf16.mxu0 0
  %1169 = vmatmul.mubr.bf16.gmra.mxu0 %v689
  %v1170 = vpop.f32.mrf.mxu0
  %v1171 = vadd.f32 0.0, %v1170
  %v1172 = vpop.f32.mrf.mxu0
  %v1173 = vpop.f32.mrf.mxu0
  %v1174 = vadd.f32 0.0, %v1173
  %v1175 = vpop.f32.mrf.mxu0
  %1176 = vmatprep.mubr.bf16.mxu0 0
  %1177 = vmatmul.mubr.bf16.gmra.mxu0 %v692
  %v1178 = vpop.f32.mrf.mxu0
  %v1179 = vadd.f32 0.0, %v1178
  %v1180 = vpop.f32.mrf.mxu0
  %v1181 = vpop.f32.mrf.mxu0
  %v1182 = vadd.f32 0.0, %v1181
  %v1183 = vpop.f32.mrf.mxu0
  %1184 = vmatprep.mubr.bf16.mxu0 0
  %1185 = vmatmul.mubr.bf16.gmra.mxu0 %v695
  %v1186 = vpop.f32.mrf.mxu0
  %v1187 = vadd.f32 0.0, %v1186
  %v1188 = vpop.f32.mrf.mxu0
  %v1189 = vpop.f32.mrf.mxu0
  %v1190 = vadd.f32 0.0, %v1189
  %v1191 = vpop.f32.mrf.mxu0
  %1192 = vmatprep.mubr.bf16.mxu0 0
  %1193 = vmatmul.mubr.bf16.gmra.mxu0 %v698
  %v1194 = vpop.f32.mrf.mxu0
  %v1195 = vadd.f32 0.0, %v1194
  %v1196 = vpop.f32.mrf.mxu0
  %v1197 = vpop.f32.mrf.mxu0
  %v1198 = vadd.f32 0.0, %v1197
  %v1199 = vpop.f32.mrf.mxu0
  %1200 = vmatprep.mubr.bf16.mxu0 0
  %1201 = vmatmul.mubr.bf16.gmra.mxu0 %v701
  %v1202 = vpop.f32.mrf.mxu0
  %v1203 = vadd.f32 0.0, %v1202
  %v1204 = vpop.f32.mrf.mxu0
  %v1205 = vpop.f32.mrf.mxu0
  %v1206 = vadd.f32 0.0, %v1205
  %v1207 = vpop.f32.mrf.mxu0
  %1208 = vmatprep.mubr.bf16.mxu0 0
  %1209 = vmatmul.mubr.bf16.gmra.mxu0 %v704
  %v1210 = vpop.f32.mrf.mxu0
  %v1211 = vadd.f32 0.0, %v1210
  %v1212 = vpop.f32.mrf.mxu0
  %v1213 = vpop.f32.mrf.mxu0
  %v1214 = vadd.f32 0.0, %v1213
  %v1215 = vpop.f32.mrf.mxu0
  %1216 = vmatprep.mubr.bf16.mxu0 0
  %1217 = vmatmul.mubr.bf16.gmra.mxu0 %v707
  %v1218 = vpop.f32.mrf.mxu0
  %v1219 = vadd.f32 0.0, %v1218
  %v1220 = vpop.f32.mrf.mxu0
  %v1221 = vpop.f32.mrf.mxu0
  %v1222 = vadd.f32 0.0, %v1221
  %v1223 = vpop.f32.mrf.mxu0
  %1224 = vmatprep.mubr.bf16.mxu0 0
  %1225 = vmatmul.mubr.bf16.gmra.mxu0 %v710
  %v1226 = vpop.f32.mrf.mxu0
  %v1227 = vadd.f32 0.0, %v1226
  %v1228 = vpop.f32.mrf.mxu0
  %v1229 = vpop.f32.mrf.mxu0
  %v1230 = vadd.f32 0.0, %v1229
  %v1231 = vpop.f32.mrf.mxu0
  %1232 = vmatprep.mubr.bf16.mxu0 0
  %1233 = vmatmul.mubr.bf16.gmra.mxu0 %v713
  %v1234 = vpop.f32.mrf.mxu0
  %v1235 = vadd.f32 0.0, %v1234
  %v1236 = vpop.f32.mrf.mxu0
  %v1237 = vpop.f32.mrf.mxu0
  %v1238 = vadd.f32 0.0, %v1237
  %v1239 = vpop.f32.mrf.mxu0
  %1240 = vmatprep.mubr.bf16.mxu0 0
  %1241 = vmatmul.mubr.bf16.gmra.mxu0 %v716
  %v1242 = vpop.f32.mrf.mxu0
  %v1243 = vadd.f32 0.0, %v1242
  %v1244 = vpop.f32.mrf.mxu0
  %v1245 = vpop.f32.mrf.mxu0
  %v1246 = vadd.f32 0.0, %v1245
  %v1247 = vpop.f32.mrf.mxu0
  %1248 = vmatprep.mubr.bf16.mxu0 0
  %1249 = vmatmul.mubr.bf16.gmra.mxu0 %v719
  %v1250 = vpop.f32.mrf.mxu0
  %v1251 = vadd.f32 0.0, %v1250
  %v1252 = vpop.f32.mrf.mxu0
  %v1253 = vpop.f32.mrf.mxu0
  %v1254 = vadd.f32 0.0, %v1253
  %v1255 = vpop.f32.mrf.mxu0
  %1256 = vmatprep.mubr.bf16.mxu0 0
  %1257 = vmatmul.mubr.bf16.gmra.mxu0 %v722
  %v1258 = vpop.f32.mrf.mxu0
  %v1259 = vadd.f32 0.0, %v1258
  %v1260 = vpop.f32.mrf.mxu0
  %v1261 = vpop.f32.mrf.mxu0
  %v1262 = vadd.f32 0.0, %v1261
  %v1263 = vpop.f32.mrf.mxu0
  %1264 = vmatprep.mubr.bf16.mxu0 0
  %1265 = vmatmul.mubr.bf16.gmra.mxu0 %v725
  %v1266 = vpop.f32.mrf.mxu0
  %v1267 = vadd.f32 0.0, %v1266
  %v1268 = vpop.f32.mrf.mxu0
  %v1269 = vpop.f32.mrf.mxu0
  %v1270 = vadd.f32 0.0, %v1269
  %v1271 = vpop.f32.mrf.mxu0
  %1272 = vmatprep.mubr.bf16.mxu0 0
  %1273 = vmatmul.mubr.bf16.gmra.mxu0 %v728
  %v1274 = vpop.f32.mrf.mxu0
  %v1275 = vadd.f32 0.0, %v1274
  %v1276 = vpop.f32.mrf.mxu0
  %v1277 = vpop.f32.mrf.mxu0
  %v1278 = vadd.f32 0.0, %v1277
  %v1279 = vpop.f32.mrf.mxu0
  %1280 = vmatprep.mubr.bf16.mxu0 0
  %1281 = vmatmul.mubr.bf16.gmra.mxu0 %v731
  %v1282 = vpop.f32.mrf.mxu0
  %v1283 = vadd.f32 0.0, %v1282
  %v1284 = vpop.f32.mrf.mxu0
  %v1285 = vpop.f32.mrf.mxu0
  %v1286 = vadd.f32 0.0, %v1285
  %v1287 = vpop.f32.mrf.mxu0
  %1288 = vmatprep.mubr.bf16.mxu0 0
  %1289 = vmatmul.mubr.bf16.gmra.mxu0 %v734
  %v1290 = vpop.f32.mrf.mxu0
  %v1291 = vadd.f32 0.0, %v1290
  %v1292 = vpop.f32.mrf.mxu0
  %v1293 = vpop.f32.mrf.mxu0
  %v1294 = vadd.f32 0.0, %v1293
  %v1295 = vpop.f32.mrf.mxu0
  %1296 = vmatprep.mubr.bf16.mxu0 0
  %1297 = vmatmul.mubr.bf16.gmra.mxu0 %v737
  %v1298 = vpop.f32.mrf.mxu0
  %v1299 = vadd.f32 0.0, %v1298
  %v1300 = vpop.f32.mrf.mxu0
  %v1301 = vpop.f32.mrf.mxu0
  %v1302 = vadd.f32 0.0, %v1301
  %v1303 = vpop.f32.mrf.mxu0
  %1304 = vmatprep.mubr.bf16.mxu0 0
  %1305 = vmatmul.mubr.bf16.gmra.mxu0 %v740
  %v1306 = vpop.f32.mrf.mxu0
  %v1307 = vadd.f32 0.0, %v1306
  %v1308 = vpop.f32.mrf.mxu0
  %v1309 = vpop.f32.mrf.mxu0
  %v1310 = vadd.f32 0.0, %v1309
  %v1311 = vpop.f32.mrf.mxu0
  %1312 = vmatprep.mubr.bf16.mxu0 0
  %1313 = vmatmul.mubr.bf16.gmra.mxu0 %v743
  %v1314 = vpop.f32.mrf.mxu0
  %v1315 = vadd.f32 0.0, %v1314
  %v1316 = vpop.f32.mrf.mxu0
  %v1317 = vpop.f32.mrf.mxu0
  %v1318 = vadd.f32 0.0, %v1317
  %v1319 = vpop.f32.mrf.mxu0
  %1320 = vmatprep.mubr.bf16.mxu0 0
  %1321 = vmatmul.mubr.bf16.gmra.mxu0 %v746
  %v1322 = vpop.f32.mrf.mxu0
  %v1323 = vadd.f32 0.0, %v1322
  %v1324 = vpop.f32.mrf.mxu0
  %v1325 = vpop.f32.mrf.mxu0
  %v1326 = vadd.f32 0.0, %v1325
  %v1327 = vpop.f32.mrf.mxu0
  %1328 = vmatprep.mubr.bf16.mxu0 0
  %1329 = vmatmul.mubr.bf16.gmra.mxu0 %v749
  %v1330 = vpop.f32.mrf.mxu0
  %v1331 = vadd.f32 0.0, %v1330
  %v1332 = vpop.f32.mrf.mxu0
  %v1333 = vpop.f32.mrf.mxu0
  %v1334 = vadd.f32 0.0, %v1333
  %v1335 = vpop.f32.mrf.mxu0
  %1336 = vmatprep.mubr.bf16.mxu0 0
  %1337 = vmatmul.mubr.bf16.gmra.mxu0 %v752
  %v1338 = vpop.f32.mrf.mxu0
  %v1339 = vadd.f32 0.0, %v1338
  %v1340 = vpop.f32.mrf.mxu0
  %v1341 = vpop.f32.mrf.mxu0
  %v1342 = vadd.f32 0.0, %v1341
  %v1343 = vpop.f32.mrf.mxu0
  %1344 = vmatprep.mubr.bf16.mxu0 0
  %1345 = vmatmul.mubr.bf16.gmra.mxu0 %v755
  %v1346 = vpop.f32.mrf.mxu0
  %v1347 = vadd.f32 0.0, %v1346
  %v1348 = vpop.f32.mrf.mxu0
  %v1349 = vpop.f32.mrf.mxu0
  %v1350 = vadd.f32 0.0, %v1349
  %v1351 = vpop.f32.mrf.mxu0
  %1352 = vmatprep.mubr.bf16.mxu0 0
  %1353 = vmatmul.mubr.bf16.gmra.mxu0 %v758
  %v1354 = vpop.f32.mrf.mxu0
  %v1355 = vadd.f32 0.0, %v1354
  %v1356 = vpop.f32.mrf.mxu0
  %v1357 = vpop.f32.mrf.mxu0
  %v1358 = vadd.f32 0.0, %v1357
  %v1359 = vpop.f32.mrf.mxu0
  %1360 = vmatprep.mubr.bf16.mxu0 0
  %1361 = vmatmul.mubr.bf16.gmra.mxu0 %v761
  %v1362 = vpop.f32.mrf.mxu0
  %v1363 = vadd.f32 0.0, %v1362
  %v1364 = vpop.f32.mrf.mxu0
  %v1365 = vpop.f32.mrf.mxu0
  %v1366 = vadd.f32 0.0, %v1365
  %v1367 = vpop.f32.mrf.mxu0
  %1368 = vmatprep.mubr.bf16.mxu0 0
  %1369 = vmatmul.mubr.bf16.gmra.mxu0 %v764
  %v1370 = vpop.f32.mrf.mxu0
  %v1371 = vadd.f32 0.0, %v1370
  %v1372 = vpop.f32.mrf.mxu0
  %v1373 = vpop.f32.mrf.mxu0
  %v1374 = vadd.f32 0.0, %v1373
  %v1375 = vpop.f32.mrf.mxu0
  %1376 = vmatprep.mubr.bf16.mxu0 0
  %1377 = vmatmul.mubr.bf16.gmra.mxu0 %v767
  %v1378 = vpop.f32.mrf.mxu0
  %v1379 = vadd.f32 0.0, %v1378
  %v1380 = vpop.f32.mrf.mxu0
  %v1381 = vpop.f32.mrf.mxu0
  %v1382 = vadd.f32 0.0, %v1381
  %v1383 = vpop.f32.mrf.mxu0
  %1384 = vdwg.mxu0
  %v1385 = vmax.f32 %v811, %v955
  %v1386 = vmax.f32 %v814, %v958
  %v1387 = vmax.f32 %v819, %v963
  %v1388 = vmax.f32 %v822, %v966
  %v1389 = vmax.f32 %v827, %v971
  %v1390 = vmax.f32 %v830, %v974
  %v1391 = vmax.f32 %v835, %v979
  %v1392 = vmax.f32 %v838, %v982
  %v1393 = vmax.f32 %v843, %v987
  %v1394 = vmax.f32 %v846, %v990
  %v1395 = vmax.f32 %v851, %v995
  %v1396 = vmax.f32 %v854, %v998
  %v1397 = vmax.f32 %v859, %v1003
  %v1398 = vmax.f32 %v862, %v1006
  %v1399 = vmax.f32 %v867, %v1011
  %v1400 = vmax.f32 %v870, %v1014
  %v1401 = vmax.f32 %v875, %v1019
  %v1402 = vmax.f32 %v878, %v1022
  %v1403 = vmax.f32 %v883, %v1027
  %v1404 = vmax.f32 %v886, %v1030
  %v1405 = vmax.f32 %v891, %v1035
  %v1406 = vmax.f32 %v894, %v1038
  %v1407 = vmax.f32 %v899, %v1043
  %v1408 = vmax.f32 %v902, %v1046
  %v1409 = vmax.f32 %v907, %v1051
  %v1410 = vmax.f32 %v910, %v1054
  %v1411 = vmax.f32 %v915, %v1059
  %v1412 = vmax.f32 %v918, %v1062
  %v1413 = vmax.f32 %v923, %v1067
  %v1414 = vmax.f32 %v926, %v1070
  %v1415 = vmax.f32 %v931, %v1075
  %v1416 = vmax.f32 %v934, %v1078
  %v1417 = vmax.f32 %v939, %v1083
  %v1418 = vmax.f32 %v942, %v1086
  %v1419 = vmax.f32 %v947, %v1091
  %v1420 = vmax.f32 %v950, %v1094
  %v1421 = vmax.f32 %v1099, %v1243
  %v1422 = vmax.f32 %v1102, %v1246
  %v1423 = vmax.f32 %v1107, %v1251
  %v1424 = vmax.f32 %v1110, %v1254
  %v1425 = vmax.f32 %v1115, %v1259
  %v1426 = vmax.f32 %v1118, %v1262
  %v1427 = vmax.f32 %v1123, %v1267
  %v1428 = vmax.f32 %v1126, %v1270
  %v1429 = vmax.f32 %v1131, %v1275
  %v1430 = vmax.f32 %v1134, %v1278
  %v1431 = vmax.f32 %v1139, %v1283
  %v1432 = vmax.f32 %v1142, %v1286
  %v1433 = vmax.f32 %v1147, %v1291
  %v1434 = vmax.f32 %v1150, %v1294
  %v1435 = vmax.f32 %v1155, %v1299
  %v1436 = vmax.f32 %v1158, %v1302
  %v1437 = vmax.f32 %v1163, %v1307
  %v1438 = vmax.f32 %v1166, %v1310
  %v1439 = vmax.f32 %v1171, %v1315
  %v1440 = vmax.f32 %v1174, %v1318
  %v1441 = vmax.f32 %v1179, %v1323
  %v1442 = vmax.f32 %v1182, %v1326
  %v1443 = vmax.f32 %v1187, %v1331
  %v1444 = vmax.f32 %v1190, %v1334
  %v1445 = vmax.f32 %v1195, %v1339
  %v1446 = vmax.f32 %v1198, %v1342
  %v1447 = vmax.f32 %v1203, %v1347
  %v1448 = vmax.f32 %v1206, %v1350
  %v1449 = vmax.f32 %v1211, %v1355
  %v1450 = vmax.f32 %v1214, %v1358
  %v1451 = vmax.f32 %v1219, %v1363
  %v1452 = vmax.f32 %v1222, %v1366
  %v1453 = vmax.f32 %v1227, %v1371
  %v1454 = vmax.f32 %v1230, %v1374
  %v1455 = vmax.f32 %v1235, %v1379
  %v1456 = vmax.f32 %v1238, %v1382
  %v1457 = vmax.f32 %v1385, %v1421
  %v1458 = vmax.f32 %v1386, %v1422
  %v1459 = vmax.f32 %v1387, %v1423
  %v1460 = vmax.f32 %v1388, %v1424
  %v1461 = vmax.f32 %v1389, %v1425
  %v1462 = vmax.f32 %v1390, %v1426
  %v1463 = vmax.f32 %v1391, %v1427
  %v1464 = vmax.f32 %v1392, %v1428
  %v1465 = vmax.f32 %v1393, %v1429
  %v1466 = vmax.f32 %v1394, %v1430
  %v1467 = vmax.f32 %v1395, %v1431
  %v1468 = vmax.f32 %v1396, %v1432
  %v1469 = vmax.f32 %v1397, %v1433
  %v1470 = vmax.f32 %v1398, %v1434
  %v1471 = vmax.f32 %v1399, %v1435
  %v1472 = vmax.f32 %v1400, %v1436
  %v1473 = vmax.f32 %v1401, %v1437
  %v1474 = vmax.f32 %v1402, %v1438
  %v1475 = vmax.f32 %v1403, %v1439
  %v1476 = vmax.f32 %v1404, %v1440
  %v1477 = vmax.f32 %v1405, %v1441
  %v1478 = vmax.f32 %v1406, %v1442
  %v1479 = vmax.f32 %v1407, %v1443
  %v1480 = vmax.f32 %v1408, %v1444
  %v1481 = vmax.f32 %v1409, %v1445
  %v1482 = vmax.f32 %v1410, %v1446
  %v1483 = vmax.f32 %v1411, %v1447
  %v1484 = vmax.f32 %v1412, %v1448
  %v1485 = vmax.f32 %v1413, %v1449
  %v1486 = vmax.f32 %v1414, %v1450
  %v1487 = vmax.f32 %v1415, %v1451
  %v1488 = vmax.f32 %v1416, %v1452
  %v1489 = vmax.f32 %v1417, %v1453
  %v1490 = vmax.f32 %v1418, %v1454
  %v1491 = vmax.f32 %v1419, %v1455
  %v1492 = vmax.f32 %v1420, %v1456
  %v1493 = vld [vmem:[%s2] sm:$0x1]
  %v1495 = vlaneseq
  %v1496 = vshrl.u32 %v1495, 7
  %v1497 = vsub.s32 0, %v1496
  %v1498 = vrot.slane %v1493, %v1497
  %v1500 = vadd.f32 %v1457, %v1498
  %v1501 = vadd.f32 %v1458, %v1498
  %v1502 = vadd.f32 %v1459, %v1498
  %v1503 = vadd.f32 %v1460, %v1498
  %v1504 = vadd.f32 %v1461, %v1498
  %v1505 = vadd.f32 %v1462, %v1498
  %v1506 = vadd.f32 %v1463, %v1498
  %v1507 = vadd.f32 %v1464, %v1498
  %v1508 = vadd.f32 %v1465, %v1498
  %v1509 = vadd.f32 %v1466, %v1498
  %v1510 = vadd.f32 %v1467, %v1498
  %v1511 = vadd.f32 %v1468, %v1498
  %v1512 = vadd.f32 %v1469, %v1498
  %v1513 = vadd.f32 %v1470, %v1498
  %v1514 = vadd.f32 %v1471, %v1498
  %v1515 = vadd.f32 %v1472, %v1498
  %v1516 = vadd.f32 %v1473, %v1498
  %v1517 = vadd.f32 %v1474, %v1498
  %v1518 = vadd.f32 %v1475, %v1498
  %v1519 = vadd.f32 %v1476, %v1498
  %v1520 = vadd.f32 %v1477, %v1498
  %v1521 = vadd.f32 %v1478, %v1498
  %v1522 = vadd.f32 %v1479, %v1498
  %v1523 = vadd.f32 %v1480, %v1498
  %v1524 = vadd.f32 %v1481, %v1498
  %v1525 = vadd.f32 %v1482, %v1498
  %v1526 = vadd.f32 %v1483, %v1498
  %v1527 = vadd.f32 %v1484, %v1498
  %v1528 = vadd.f32 %v1485, %v1498
  %v1529 = vadd.f32 %v1486, %v1498
  %v1530 = vadd.f32 %v1487, %v1498
  %v1531 = vadd.f32 %v1488, %v1498
  %v1532 = vadd.f32 %v1489, %v1498
  %v1533 = vadd.f32 %v1490, %v1498
  %v1534 = vadd.f32 %v1491, %v1498
  %v1535 = vadd.f32 %v1492, %v1498
  %v1536 = vmax.f32 %v1500, 0.0
  %v1537 = vmax.f32 %v1501, 0.0
  %v1538 = vmax.f32 %v1502, 0.0
  %v1539 = vmax.f32 %v1503, 0.0
  %v1540 = vmax.f32 %v1504, 0.0
  %v1541 = vmax.f32 %v1505, 0.0
  %v1542 = vmax.f32 %v1506, 0.0
  %v1543 = vmax.f32 %v1507, 0.0
  %v1544 = vmax.f32 %v1508, 0.0
  %v1545 = vmax.f32 %v1509, 0.0
  %v1546 = vmax.f32 %v1510, 0.0
  %v1547 = vmax.f32 %v1511, 0.0
  %v1548 = vmax.f32 %v1512, 0.0
  %v1549 = vmax.f32 %v1513, 0.0
  %v1550 = vmax.f32 %v1514, 0.0
  %v1551 = vmax.f32 %v1515, 0.0
  %v1552 = vmax.f32 %v1516, 0.0
  %v1553 = vmax.f32 %v1517, 0.0
  %v1554 = vmax.f32 %v1518, 0.0
  %v1555 = vmax.f32 %v1519, 0.0
  %v1556 = vmax.f32 %v1520, 0.0
  %v1557 = vmax.f32 %v1521, 0.0
  %v1558 = vmax.f32 %v1522, 0.0
  %v1559 = vmax.f32 %v1523, 0.0
  %v1560 = vmax.f32 %v1524, 0.0
  %v1561 = vmax.f32 %v1525, 0.0
  %v1562 = vmax.f32 %v1526, 0.0
  %v1563 = vmax.f32 %v1527, 0.0
  %v1564 = vmax.f32 %v1528, 0.0
  %v1565 = vmax.f32 %v1529, 0.0
  %v1566 = vmax.f32 %v1530, 0.0
  %v1567 = vmax.f32 %v1531, 0.0
  %v1568 = vmax.f32 %v1532, 0.0
  %v1569 = vmax.f32 %v1533, 0.0
  %v1570 = vmax.f32 %v1534, 0.0
  %v1571 = vmax.f32 %v1535, 0.0
  %vm1572 = vcmask 261120
  %1573 = vst.msk [vmem:[#allocation2] sm:$0xff] %vm1572, %v1536
  %1575 = vrot.lane.b32.xlu0 %v1537, 32
  %v1576 = vpop.permute.xlu0 %1575
  %vm1578 = vcmask 523520
  %1579 = vst.msk [vmem:[#allocation2] sm:$0xff] %vm1578, %v1576
  %1581 = vrot.lane.b32.xlu0 %v1538, 64
  %v1582 = vpop.permute.xlu0 %1581
  %vm1584 = vcmask 785920
  %1585 = vst.msk [vmem:[#allocation2] sm:$0xff] %vm1584, %v1582
  %1587 = vrot.lane.b32.xlu0 %v1539, 96
  %v1588 = vpop.permute.xlu0 %1587
  %vm1590 = vcmask 1048320
  %1591 = vst.msk [vmem:[#allocation2] sm:$0xff] %vm1590, %v1588
  %1592 = vst.msk [vmem:[#allocation2 + $0x8] sm:$0xff] %vm1572, %v1540
  %1594 = vrot.lane.b32.xlu0 %v1541, 32
  %v1595 = vpop.permute.xlu0 %1594
  %1597 = vst.msk [vmem:[#allocation2 + $0x8] sm:$0xff] %vm1578, %v1595
  %1599 = vrot.lane.b32.xlu0 %v1542, 64
  %v1600 = vpop.permute.xlu0 %1599
  %1602 = vst.msk [vmem:[#allocation2 + $0x8] sm:$0xff] %vm1584, %v1600
  %1604 = vrot.lane.b32.xlu0 %v1543, 96
  %v1605 = vpop.permute.xlu0 %1604
  %1607 = vst.msk [vmem:[#allocation2 + $0x8] sm:$0xff] %vm1590, %v1605
  %1608 = vst.msk [vmem:[#allocation2 + $0x10] sm:$0xff] %vm1572, %v1544
  %1610 = vrot.lane.b32.xlu0 %v1545, 32
  %v1611 = vpop.permute.xlu0 %1610
  %1613 = vst.msk [vmem:[#allocation2 + $0x10] sm:$0xff] %vm1578, %v1611
  %1615 = vrot.lane.b32.xlu0 %v1546, 64
  %v1616 = vpop.permute.xlu0 %1615
  %1618 = vst.msk [vmem:[#allocation2 + $0x10] sm:$0xff] %vm1584, %v1616
  %1620 = vrot.lane.b32.xlu0 %v1547, 96
  %v1621 = vpop.permute.xlu0 %1620
  %1623 = vst.msk [vmem:[#allocation2 + $0x10] sm:$0xff] %vm1590, %v1621
  %1624 = vst.msk [vmem:[#allocation2 + $0x18] sm:$0xff] %vm1572, %v1548
  %1626 = vrot.lane.b32.xlu0 %v1549, 32
  %v1627 = vpop.permute.xlu0 %1626
  %1629 = vst.msk [vmem:[#allocation2 + $0x18] sm:$0xff] %vm1578, %v1627
  %1631 = vrot.lane.b32.xlu0 %v1550, 64
  %v1632 = vpop.permute.xlu0 %1631
  %1634 = vst.msk [vmem:[#allocation2 + $0x18] sm:$0xff] %vm1584, %v1632
  %1636 = vrot.lane.b32.xlu0 %v1551, 96
  %v1637 = vpop.permute.xlu0 %1636
  %1639 = vst.msk [vmem:[#allocation2 + $0x18] sm:$0xff] %vm1590, %v1637
  %1640 = vst.msk [vmem:[#allocation2 + $0x20] sm:$0xff] %vm1572, %v1552
  %1642 = vrot.lane.b32.xlu0 %v1553, 32
  %v1643 = vpop.permute.xlu0 %1642
  %1645 = vst.msk [vmem:[#allocation2 + $0x20] sm:$0xff] %vm1578, %v1643
  %1647 = vrot.lane.b32.xlu0 %v1554, 64
  %v1648 = vpop.permute.xlu0 %1647
  %1650 = vst.msk [vmem:[#allocation2 + $0x20] sm:$0xff] %vm1584, %v1648
  %1652 = vrot.lane.b32.xlu0 %v1555, 96
  %v1653 = vpop.permute.xlu0 %1652
  %1655 = vst.msk [vmem:[#allocation2 + $0x20] sm:$0xff] %vm1590, %v1653
  %1656 = vst.msk [vmem:[#allocation2 + $0x28] sm:$0xff] %vm1572, %v1556
  %1658 = vrot.lane.b32.xlu0 %v1557, 32
  %v1659 = vpop.permute.xlu0 %1658
  %1661 = vst.msk [vmem:[#allocation2 + $0x28] sm:$0xff] %vm1578, %v1659
  %1663 = vrot.lane.b32.xlu0 %v1558, 64
  %v1664 = vpop.permute.xlu0 %1663
  %1666 = vst.msk [vmem:[#allocation2 + $0x28] sm:$0xff] %vm1584, %v1664
  %1668 = vrot.lane.b32.xlu0 %v1559, 96
  %v1669 = vpop.permute.xlu0 %1668
  %1671 = vst.msk [vmem:[#allocation2 + $0x28] sm:$0xff] %vm1590, %v1669
  %1672 = vst.msk [vmem:[#allocation2 + $0x30] sm:$0xff] %vm1572, %v1560
  %1674 = vrot.lane.b32.xlu0 %v1561, 32
  %v1675 = vpop.permute.xlu0 %1674
  %1677 = vst.msk [vmem:[#allocation2 + $0x30] sm:$0xff] %vm1578, %v1675
  %1679 = vrot.lane.b32.xlu0 %v1562, 64
  %v1680 = vpop.permute.xlu0 %1679
  %1682 = vst.msk [vmem:[#allocation2 + $0x30] sm:$0xff] %vm1584, %v1680
  %1684 = vrot.lane.b32.xlu0 %v1563, 96
  %v1685 = vpop.permute.xlu0 %1684
  %1687 = vst.msk [vmem:[#allocation2 + $0x30] sm:$0xff] %vm1590, %v1685
  %1688 = vst.msk [vmem:[#allocation2 + $0x38] sm:$0xff] %vm1572, %v1564
  %1690 = vrot.lane.b32.xlu0 %v1565, 32
  %v1691 = vpop.permute.xlu0 %1690
  %1693 = vst.msk [vmem:[#allocation2 + $0x38] sm:$0xff] %vm1578, %v1691
  %1695 = vrot.lane.b32.xlu0 %v1566, 64
  %v1696 = vpop.permute.xlu0 %1695
  %1698 = vst.msk [vmem:[#allocation2 + $0x38] sm:$0xff] %vm1584, %v1696
  %1700 = vrot.lane.b32.xlu0 %v1567, 96
  %v1701 = vpop.permute.xlu0 %1700
  %1703 = vst.msk [vmem:[#allocation2 + $0x38] sm:$0xff] %vm1590, %v1701
  %1704 = vst.msk [vmem:[#allocation2 + $0x40] sm:$0xff] %vm1572, %v1568
  %1706 = vrot.lane.b32.xlu0 %v1569, 32
  %v1707 = vpop.permute.xlu0 %1706
  %1709 = vst.msk [vmem:[#allocation2 + $0x40] sm:$0xff] %vm1578, %v1707
  %1711 = vrot.lane.b32.xlu0 %v1570, 64
  %v1712 = vpop.permute.xlu0 %1711
  %1714 = vst.msk [vmem:[#allocation2 + $0x40] sm:$0xff] %vm1584, %v1712
  %1716 = vrot.lane.b32.xlu0 %v1571, 96
  %v1717 = vpop.permute.xlu0 %1716
  %1719 = vst.msk [vmem:[#allocation2 + $0x40] sm:$0xff] %vm1590, %v1717
  %v1720 = vld [vmem:[#allocation2] sm:$0xff]
  %v1721 = vld [vmem:[#allocation2 + $0x8] sm:$0xff]
  %v1722 = vld [vmem:[#allocation2 + $0x10] sm:$0xff]
  %v1723 = vld [vmem:[#allocation2 + $0x18] sm:$0xff]
  %v1724 = vld [vmem:[#allocation2 + $0x20] sm:$0xff]
  %v1725 = vld [vmem:[#allocation2 + $0x28] sm:$0xff]
  %v1726 = vld [vmem:[#allocation2 + $0x30] sm:$0xff]
  %v1727 = vld [vmem:[#allocation2 + $0x38] sm:$0xff]
  %v1728 = vld [vmem:[#allocation2 + $0x40] sm:$0xff]
  %v1729 = vpack.c.bf16 %v1720, %v1720
  %v1730 = vpack.c.bf16 %v1721, %v1721
  %v1731 = vpack.c.bf16 %v1722, %v1722
  %v1732 = vpack.c.bf16 %v1723, %v1723
  %v1733 = vpack.c.bf16 %v1724, %v1724
  %v1734 = vpack.c.bf16 %v1725, %v1725
  %v1735 = vpack.c.bf16 %v1726, %v1726
  %v1736 = vpack.c.bf16 %v1727, %v1727
  %v1737 = vpack.c.bf16 %v1728, %v1728
  %v1738 = vld [vmem:[%s3] sm:$0xff]
  %v1739 = vld [vmem:[%s3 + $0x8] sm:$0xff]
  %v1740 = vld [vmem:[%s3 + $0x10] sm:$0xff]
  %v1741 = vld [vmem:[%s3 + $0x18] sm:$0xff]
  %v1742 = vld [vmem:[%s3 + $0x20] sm:$0xff]
  %v1743 = vld [vmem:[%s3 + $0x28] sm:$0xff]
  %v1744 = vld [vmem:[%s3 + $0x30] sm:$0xff]
  %v1745 = vld [vmem:[%s3 + $0x38] sm:$0xff]
  %v1746 = vld [vmem:[%s3 + $0x40] sm:$0xff]
  %v1747 = vld [vmem:[%s3 + $0x48] sm:$0xff]
  %v1748 = vld [vmem:[%s3 + $0x50] sm:$0xff]
  %v1749 = vld [vmem:[%s3 + $0x58] sm:$0xff]
  %v1750 = vld [vmem:[%s3 + $0x60] sm:$0xff]
  %v1751 = vld [vmem:[%s3 + $0x68] sm:$0xff]
  %v1752 = vld [vmem:[%s3 + $0x70] sm:$0xff]
  %v1753 = vld [vmem:[%s3 + $0x78] sm:$0xff]
  %v1754 = vld [vmem:[%s3 + $0x80] sm:$0xff]
  %v1755 = vld [vmem:[%s3 + $0x88] sm:$0xff]
  %v1756 = vld [vmem:[%s3 + $0x90] sm:$0xff]
  %v1757 = vld [vmem:[%s3 + $0x98] sm:$0xff]
  %v1758 = vld [vmem:[%s3 + $0xa0] sm:$0xff]
  %v1759 = vld [vmem:[%s3 + $0xa8] sm:$0xff]
  %v1760 = vld [vmem:[%s3 + $0xb0] sm:$0xff]
  %v1761 = vld [vmem:[%s3 + $0xb8] sm:$0xff]
  %v1762 = vld [vmem:[%s3 + $0xc0] sm:$0xff]
  %v1763 = vld [vmem:[%s3 + $0xc8] sm:$0xff]
  %v1764 = vld [vmem:[%s3 + $0xd0] sm:$0xff]
  %v1765 = vld [vmem:[%s3 + $0xd8] sm:$0xff]
  %v1766 = vld [vmem:[%s3 + $0xe0] sm:$0xff]
  %v1767 = vld [vmem:[%s3 + $0xe8] sm:$0xff]
  %v1768 = vld [vmem:[%s3 + $0xf0] sm:$0xff]
  %v1769 = vld [vmem:[%s3 + $0xf8] sm:$0xff]
  %v1770 = vld [vmem:[%s3 + $0x100] sm:$0xff]
  %v1771 = vld [vmem:[%s3 + $0x108] sm:$0xff]
  %v1772 = vld [vmem:[%s3 + $0x110] sm:$0xff]
  %v1773 = vld [vmem:[%s3 + $0x118] sm:$0xff]
  %v1774 = vld [vmem:[%s3 + $0x120] sm:$0xff]
  %v1775 = vld [vmem:[%s3 + $0x128] sm:$0xff]
  %v1776 = vld [vmem:[%s3 + $0x130] sm:$0xff]
  %v1777 = vld [vmem:[%s3 + $0x138] sm:$0xff]
  %v1778 = vld [vmem:[%s3 + $0x140] sm:$0xff]
  %v1779 = vld [vmem:[%s3 + $0x148] sm:$0xff]
  %v1780 = vld [vmem:[%s3 + $0x150] sm:$0xff]
  %v1781 = vld [vmem:[%s3 + $0x158] sm:$0xff]
  %v1782 = vld [vmem:[%s3 + $0x160] sm:$0xff]
  %v1783 = vld [vmem:[%s3 + $0x168] sm:$0xff]
  %v1784 = vld [vmem:[%s3 + $0x170] sm:$0xff]
  %v1785 = vld [vmem:[%s3 + $0x178] sm:$0xff]
  %v1786 = vld [vmem:[%s3 + $0x180] sm:$0xff]
  %v1787 = vld [vmem:[%s3 + $0x188] sm:$0xff]
  %v1788 = vld [vmem:[%s3 + $0x190] sm:$0xff]
  %v1789 = vld [vmem:[%s3 + $0x198] sm:$0xff]
  %v1790 = vld [vmem:[%s3 + $0x1a0] sm:$0xff]
  %v1791 = vld [vmem:[%s3 + $0x1a8] sm:$0xff]
  %v1792 = vld [vmem:[%s3 + $0x1b0] sm:$0xff]
  %v1793 = vld [vmem:[%s3 + $0x1b8] sm:$0xff]
  %v1794 = vld [vmem:[%s3 + $0x1c0] sm:$0xff]
  %v1795 = vld [vmem:[%s3 + $0x1c8] sm:$0xff]
  %v1796 = vld [vmem:[%s3 + $0x1d0] sm:$0xff]
  %v1797 = vld [vmem:[%s3 + $0x1d8] sm:$0xff]
  %v1798 = vld [vmem:[%s3 + $0x1e0] sm:$0xff]
  %v1799 = vld [vmem:[%s3 + $0x1e8] sm:$0xff]
  %v1800 = vld [vmem:[%s3 + $0x1f0] sm:$0xff]
  %v1801 = vld [vmem:[%s3 + $0x1f8] sm:$0xff]
  %v1802 = vld [vmem:[%s3 + $0x200] sm:$0xff]
  %v1803 = vld [vmem:[%s3 + $0x208] sm:$0xff]
  %v1804 = vld [vmem:[%s3 + $0x210] sm:$0xff]
  %v1805 = vld [vmem:[%s3 + $0x218] sm:$0xff]
  %v1806 = vld [vmem:[%s3 + $0x220] sm:$0xff]
  %v1807 = vld [vmem:[%s3 + $0x228] sm:$0xff]
  %v1808 = vld [vmem:[%s3 + $0x230] sm:$0xff]
  %v1809 = vld [vmem:[%s3 + $0x238] sm:$0xff]
  %v1810 = vld [vmem:[%s3 + $0x240] sm:$0xff]
  %v1811 = vld [vmem:[%s3 + $0x248] sm:$0xff]
  %v1812 = vld [vmem:[%s3 + $0x250] sm:$0xff]
  %v1813 = vld [vmem:[%s3 + $0x258] sm:$0xff]
  %v1814 = vld [vmem:[%s3 + $0x260] sm:$0xff]
  %v1815 = vld [vmem:[%s3 + $0x268] sm:$0xff]
  %v1816 = vld [vmem:[%s3 + $0x270] sm:$0xff]
  %v1817 = vld [vmem:[%s3 + $0x278] sm:$0xff]
  %v1818 = vld [vmem:[%s3 + $0x280] sm:$0xff]
  %v1819 = vld [vmem:[%s3 + $0x288] sm:$0xff]
  %v1820 = vld [vmem:[%s3 + $0x290] sm:$0xff]
  %v1821 = vld [vmem:[%s3 + $0x298] sm:$0xff]
  %v1822 = vld [vmem:[%s3 + $0x2a0] sm:$0xff]
  %v1823 = vld [vmem:[%s3 + $0x2a8] sm:$0xff]
  %v1824 = vld [vmem:[%s3 + $0x2b0] sm:$0xff]
  %v1825 = vld [vmem:[%s3 + $0x2b8] sm:$0xff]
  %v1826 = vld [vmem:[%s3 + $0x2c0] sm:$0xff]
  %v1827 = vld [vmem:[%s3 + $0x2c8] sm:$0xff]
  %v1828 = vld [vmem:[%s3 + $0x2d0] sm:$0xff]
  %v1829 = vld [vmem:[%s3 + $0x2d8] sm:$0xff]
  %v1830 = vld [vmem:[%s3 + $0x2e0] sm:$0xff]
  %v1831 = vld [vmem:[%s3 + $0x2e8] sm:$0xff]
  %v1832 = vld [vmem:[%s3 + $0x2f0] sm:$0xff]
  %v1833 = vld [vmem:[%s3 + $0x2f8] sm:$0xff]
  %v1834 = vld [vmem:[%s3 + $0x300] sm:$0xff]
  %v1835 = vld [vmem:[%s3 + $0x308] sm:$0xff]
  %v1836 = vld [vmem:[%s3 + $0x310] sm:$0xff]
  %v1837 = vld [vmem:[%s3 + $0x318] sm:$0xff]
  %v1838 = vld [vmem:[%s3 + $0x320] sm:$0xff]
  %v1839 = vld [vmem:[%s3 + $0x328] sm:$0xff]
  %v1840 = vld [vmem:[%s3 + $0x330] sm:$0xff]
  %v1841 = vld [vmem:[%s3 + $0x338] sm:$0xff]
  %v1842 = vld [vmem:[%s3 + $0x340] sm:$0xff]
  %v1843 = vld [vmem:[%s3 + $0x348] sm:$0xff]
  %v1844 = vld [vmem:[%s3 + $0x350] sm:$0xff]
  %v1845 = vld [vmem:[%s3 + $0x358] sm:$0xff]
  %v1846 = vld [vmem:[%s3 + $0x360] sm:$0xff]
  %v1847 = vld [vmem:[%s3 + $0x368] sm:$0xff]
  %v1848 = vld [vmem:[%s3 + $0x370] sm:$0xff]
  %v1849 = vld [vmem:[%s3 + $0x378] sm:$0xff]
  %v1850 = vld [vmem:[%s3 + $0x380] sm:$0xff]
  %v1851 = vld [vmem:[%s3 + $0x388] sm:$0xff]
  %v1852 = vld [vmem:[%s3 + $0x390] sm:$0xff]
  %v1853 = vld [vmem:[%s3 + $0x398] sm:$0xff]
  %v1854 = vld [vmem:[%s3 + $0x3a0] sm:$0xff]
  %v1855 = vld [vmem:[%s3 + $0x3a8] sm:$0xff]
  %v1856 = vld [vmem:[%s3 + $0x3b0] sm:$0xff]
  %v1857 = vld [vmem:[%s3 + $0x3b8] sm:$0xff]
  %v1858 = vld [vmem:[%s3 + $0x3c0] sm:$0xff]
  %v1859 = vld [vmem:[%s3 + $0x3c8] sm:$0xff]
  %v1860 = vld [vmem:[%s3 + $0x3d0] sm:$0xff]
  %v1861 = vld [vmem:[%s3 + $0x3d8] sm:$0xff]
  %v1862 = vld [vmem:[%s3 + $0x3e0] sm:$0xff]
  %v1863 = vld [vmem:[%s3 + $0x3e8] sm:$0xff]
  %v1864 = vld [vmem:[%s3 + $0x3f0] sm:$0xff]
  %v1865 = vld [vmem:[%s3 + $0x3f8] sm:$0xff]
  %v1866 = vld [vmem:[%s3 + $0x400] sm:$0xff]
  %v1867 = vld [vmem:[%s3 + $0x408] sm:$0xff]
  %v1868 = vld [vmem:[%s3 + $0x410] sm:$0xff]
  %v1869 = vld [vmem:[%s3 + $0x418] sm:$0xff]
  %v1870 = vld [vmem:[%s3 + $0x420] sm:$0xff]
  %v1871 = vld [vmem:[%s3 + $0x428] sm:$0xff]
  %v1872 = vld [vmem:[%s3 + $0x430] sm:$0xff]
  %v1873 = vld [vmem:[%s3 + $0x438] sm:$0xff]
  %v1874 = vld [vmem:[%s3 + $0x440] sm:$0xff]
  %v1875 = vld [vmem:[%s3 + $0x448] sm:$0xff]
  %v1876 = vld [vmem:[%s3 + $0x450] sm:$0xff]
  %v1877 = vld [vmem:[%s3 + $0x458] sm:$0xff]
  %v1878 = vld [vmem:[%s3 + $0x460] sm:$0xff]
  %v1879 = vld [vmem:[%s3 + $0x468] sm:$0xff]
  %v1880 = vld [vmem:[%s3 + $0x470] sm:$0xff]
  %v1881 = vld [vmem:[%s3 + $0x478] sm:$0xff]
  %v1882 = vld [vmem:[%s4] sm:$0x3]
  %v1884 = vlaneseq
  %v1885 = vshrl.u32 %v1884, 7
  %v1886 = vsub.s32 0, %v1885
  %v1887 = vrot.slane %v1882, %v1886
  %v1888 = vlaneseq
  %v1889 = vshrl.u32 %v1888, 7
  %v1890 = vsub.s32 1, %v1889
  %v1891 = vrot.slane %v1882, %v1890
  %v2038 = vunpack.c.l.b16 %v1738
  %v2039 = vunpack.c.h.b16 %v1738
  %v2040 = vunpack.c.l.b16 %v1739
  %v2041 = vunpack.c.h.b16 %v1739
  %v2042 = vunpack.c.l.b16 %v1740
  %v2043 = vunpack.c.h.b16 %v1740
  %v2044 = vunpack.c.l.b16 %v1741
  %v2045 = vunpack.c.h.b16 %v1741
  %v2046 = vunpack.c.l.b16 %v1742
  %v2047 = vunpack.c.h.b16 %v1742
  %v2048 = vunpack.c.l.b16 %v1743
  %v2049 = vunpack.c.h.b16 %v1743
  %v2050 = vunpack.c.l.b16 %v1744
  %v2051 = vunpack.c.h.b16 %v1744
  %v2052 = vunpack.c.l.b16 %v1745
  %v2053 = vunpack.c.h.b16 %v1745
  %v2054 = vunpack.c.l.b16 %v1746
  %v2055 = vunpack.c.h.b16 %v1746
  %v2056 = vunpack.c.l.b16 %v1747
  %v2057 = vunpack.c.h.b16 %v1747
  %v2058 = vunpack.c.l.b16 %v1748
  %v2059 = vunpack.c.h.b16 %v1748
  %v2060 = vunpack.c.l.b16 %v1749
  %v2061 = vunpack.c.h.b16 %v1749
  %v2062 = vunpack.c.l.b16 %v1750
  %v2063 = vunpack.c.h.b16 %v1750
  %v2064 = vunpack.c.l.b16 %v1751
  %v2065 = vunpack.c.h.b16 %v1751
  %v2066 = vunpack.c.l.b16 %v1752
  %v2067 = vunpack.c.h.b16 %v1752
  %v2068 = vunpack.c.l.b16 %v1753
  %v2069 = vunpack.c.h.b16 %v1753
  %v2070 = vunpack.c.l.b16 %v1754
  %v2071 = vunpack.c.h.b16 %v1754
  %v2072 = vunpack.c.l.b16 %v1755
  %v2073 = vunpack.c.h.b16 %v1755
  %v2074 = vunpack.c.l.b16 %v1756
  %v2075 = vunpack.c.h.b16 %v1756
  %v2076 = vunpack.c.l.b16 %v1757
  %v2077 = vunpack.c.h.b16 %v1757
  %v2078 = vunpack.c.l.b16 %v1758
  %v2079 = vunpack.c.h.b16 %v1758
  %v2080 = vunpack.c.l.b16 %v1759
  %v2081 = vunpack.c.h.b16 %v1759
  %v2082 = vunpack.c.l.b16 %v1760
  %v2083 = vunpack.c.h.b16 %v1760
  %v2084 = vunpack.c.l.b16 %v1761
  %v2085 = vunpack.c.h.b16 %v1761
  %v2086 = vunpack.c.l.b16 %v1762
  %v2087 = vunpack.c.h.b16 %v1762
  %v2088 = vunpack.c.l.b16 %v1763
  %v2089 = vunpack.c.h.b16 %v1763
  %v2090 = vunpack.c.l.b16 %v1764
  %v2091 = vunpack.c.h.b16 %v1764
  %v2092 = vunpack.c.l.b16 %v1765
  %v2093 = vunpack.c.h.b16 %v1765
  %v2094 = vunpack.c.l.b16 %v1766
  %v2095 = vunpack.c.h.b16 %v1766
  %v2096 = vunpack.c.l.b16 %v1767
  %v2097 = vunpack.c.h.b16 %v1767
  %v2098 = vunpack.c.l.b16 %v1768
  %v2099 = vunpack.c.h.b16 %v1768
  %v2100 = vunpack.c.l.b16 %v1769
  %v2101 = vunpack.c.h.b16 %v1769
  %v2102 = vunpack.c.l.b16 %v1770
  %v2103 = vunpack.c.h.b16 %v1770
  %v2104 = vunpack.c.l.b16 %v1771
  %v2105 = vunpack.c.h.b16 %v1771
  %v2106 = vunpack.c.l.b16 %v1772
  %v2107 = vunpack.c.h.b16 %v1772
  %v2108 = vunpack.c.l.b16 %v1773
  %v2109 = vunpack.c.h.b16 %v1773
  %v2110 = vunpack.c.l.b16 %v1774
  %v2111 = vunpack.c.h.b16 %v1774
  %v2112 = vunpack.c.l.b16 %v1775
  %v2113 = vunpack.c.h.b16 %v1775
  %v2114 = vunpack.c.l.b16 %v1776
  %v2115 = vunpack.c.h.b16 %v1776
  %v2116 = vunpack.c.l.b16 %v1777
  %v2117 = vunpack.c.h.b16 %v1777
  %v2118 = vunpack.c.l.b16 %v1778
  %v2119 = vunpack.c.h.b16 %v1778
  %v2120 = vunpack.c.l.b16 %v1779
  %v2121 = vunpack.c.h.b16 %v1779
  %v2122 = vunpack.c.l.b16 %v1780
  %v2123 = vunpack.c.h.b16 %v1780
  %v2124 = vunpack.c.l.b16 %v1781
  %v2125 = vunpack.c.h.b16 %v1781
  %v2126 = vunpack.c.l.b16 %v1782
  %v2127 = vunpack.c.h.b16 %v1782
  %v2128 = vunpack.c.l.b16 %v1783
  %v2129 = vunpack.c.h.b16 %v1783
  %v2130 = vunpack.c.l.b16 %v1784
  %v2131 = vunpack.c.h.b16 %v1784
  %v2132 = vunpack.c.l.b16 %v1785
  %v2133 = vunpack.c.h.b16 %v1785
  %v2134 = vunpack.c.l.b16 %v1786
  %v2135 = vunpack.c.h.b16 %v1786
  %v2136 = vunpack.c.l.b16 %v1787
  %v2137 = vunpack.c.h.b16 %v1787
  %v2138 = vunpack.c.l.b16 %v1788
  %v2139 = vunpack.c.h.b16 %v1788
  %v2140 = vunpack.c.l.b16 %v1789
  %v2141 = vunpack.c.h.b16 %v1789
  %v2142 = vunpack.c.l.b16 %v1790
  %v2143 = vunpack.c.h.b16 %v1790
  %v2144 = vunpack.c.l.b16 %v1791
  %v2145 = vunpack.c.h.b16 %v1791
  %v2146 = vunpack.c.l.b16 %v1792
  %v2147 = vunpack.c.h.b16 %v1792
  %v2148 = vunpack.c.l.b16 %v1793
  %v2149 = vunpack.c.h.b16 %v1793
  %v2150 = vunpack.c.l.b16 %v1794
  %v2151 = vunpack.c.h.b16 %v1794
  %v2152 = vunpack.c.l.b16 %v1795
  %v2153 = vunpack.c.h.b16 %v1795
  %v2154 = vunpack.c.l.b16 %v1796
  %v2155 = vunpack.c.h.b16 %v1796
  %v2156 = vunpack.c.l.b16 %v1797
  %v2157 = vunpack.c.h.b16 %v1797
  %v2158 = vunpack.c.l.b16 %v1798
  %v2159 = vunpack.c.h.b16 %v1798
  %v2160 = vunpack.c.l.b16 %v1799
  %v2161 = vunpack.c.h.b16 %v1799
  %v2162 = vunpack.c.l.b16 %v1800
  %v2163 = vunpack.c.h.b16 %v1800
  %v2164 = vunpack.c.l.b16 %v1801
  %v2165 = vunpack.c.h.b16 %v1801
  %v2166 = vunpack.c.l.b16 %v1802
  %v2167 = vunpack.c.h.b16 %v1802
  %v2168 = vunpack.c.l.b16 %v1803
  %v2169 = vunpack.c.h.b16 %v1803
  %v2170 = vunpack.c.l.b16 %v1804
  %v2171 = vunpack.c.h.b16 %v1804
  %v2172 = vunpack.c.l.b16 %v1805
  %v2173 = vunpack.c.h.b16 %v1805
  %v2174 = vunpack.c.l.b16 %v1806
  %v2175 = vunpack.c.h.b16 %v1806
  %v2176 = vunpack.c.l.b16 %v1807
  %v2177 = vunpack.c.h.b16 %v1807
  %v2178 = vunpack.c.l.b16 %v1808
  %v2179 = vunpack.c.h.b16 %v1808
  %v2180 = vunpack.c.l.b16 %v1809
  %v2181 = vunpack.c.h.b16 %v1809
  %v2182 = vunpack.c.l.b16 %v1810
  %v2183 = vunpack.c.h.b16 %v1810
  %v2184 = vunpack.c.l.b16 %v1811
  %v2185 = vunpack.c.h.b16 %v1811
  %v2186 = vunpack.c.l.b16 %v1812
  %v2187 = vunpack.c.h.b16 %v1812
  %v2188 = vunpack.c.l.b16 %v1813
  %v2189 = vunpack.c.h.b16 %v1813
  %v2190 = vunpack.c.l.b16 %v1814
  %v2191 = vunpack.c.h.b16 %v1814
  %v2192 = vunpack.c.l.b16 %v1815
  %v2193 = vunpack.c.h.b16 %v1815
  %v2194 = vunpack.c.l.b16 %v1816
  %v2195 = vunpack.c.h.b16 %v1816
  %v2196 = vunpack.c.l.b16 %v1817
  %v2197 = vunpack.c.h.b16 %v1817
  %v2198 = vunpack.c.l.b16 %v1818
  %v2199 = vunpack.c.h.b16 %v1818
  %v2200 = vunpack.c.l.b16 %v1819
  %v2201 = vunpack.c.h.b16 %v1819
  %v2202 = vunpack.c.l.b16 %v1820
  %v2203 = vunpack.c.h.b16 %v1820
  %v2204 = vunpack.c.l.b16 %v1821
  %v2205 = vunpack.c.h.b16 %v1821
  %v2206 = vunpack.c.l.b16 %v1822
  %v2207 = vunpack.c.h.b16 %v1822
  %v2208 = vunpack.c.l.b16 %v1823
  %v2209 = vunpack.c.h.b16 %v1823
  %v2210 = vunpack.c.l.b16 %v1824
  %v2211 = vunpack.c.h.b16 %v1824
  %v2212 = vunpack.c.l.b16 %v1825
  %v2213 = vunpack.c.h.b16 %v1825
  %v2214 = vunpack.c.l.b16 %v1826
  %v2215 = vunpack.c.h.b16 %v1826
  %v2216 = vunpack.c.l.b16 %v1827
  %v2217 = vunpack.c.h.b16 %v1827
  %v2218 = vunpack.c.l.b16 %v1828
  %v2219 = vunpack.c.h.b16 %v1828
  %v2220 = vunpack.c.l.b16 %v1829
  %v2221 = vunpack.c.h.b16 %v1829
  %v2222 = vunpack.c.l.b16 %v1830
  %v2223 = vunpack.c.h.b16 %v1830
  %v2224 = vunpack.c.l.b16 %v1831
  %v2225 = vunpack.c.h.b16 %v1831
  %v2226 = vunpack.c.l.b16 %v1832
  %v2227 = vunpack.c.h.b16 %v1832
  %v2228 = vunpack.c.l.b16 %v1833
  %v2229 = vunpack.c.h.b16 %v1833
  %v2230 = vunpack.c.l.b16 %v1834
  %v2231 = vunpack.c.h.b16 %v1834
  %v2232 = vunpack.c.l.b16 %v1835
  %v2233 = vunpack.c.h.b16 %v1835
  %v2234 = vunpack.c.l.b16 %v1836
  %v2235 = vunpack.c.h.b16 %v1836
  %v2236 = vunpack.c.l.b16 %v1837
  %v2237 = vunpack.c.h.b16 %v1837
  %v2238 = vunpack.c.l.b16 %v1838
  %v2239 = vunpack.c.h.b16 %v1838
  %v2240 = vunpack.c.l.b16 %v1839
  %v2241 = vunpack.c.h.b16 %v1839
  %v2242 = vunpack.c.l.b16 %v1840
  %v2243 = vunpack.c.h.b16 %v1840
  %v2244 = vunpack.c.l.b16 %v1841
  %v2245 = vunpack.c.h.b16 %v1841
  %v2246 = vunpack.c.l.b16 %v1842
  %v2247 = vunpack.c.h.b16 %v1842
  %v2248 = vunpack.c.l.b16 %v1843
  %v2249 = vunpack.c.h.b16 %v1843
  %v2250 = vunpack.c.l.b16 %v1844
  %v2251 = vunpack.c.h.b16 %v1844
  %v2252 = vunpack.c.l.b16 %v1845
  %v2253 = vunpack.c.h.b16 %v1845
  %v2254 = vunpack.c.l.b16 %v1846
  %v2255 = vunpack.c.h.b16 %v1846
  %v2256 = vunpack.c.l.b16 %v1847
  %v2257 = vunpack.c.h.b16 %v1847
  %v2258 = vunpack.c.l.b16 %v1848
  %v2259 = vunpack.c.h.b16 %v1848
  %v2260 = vunpack.c.l.b16 %v1849
  %v2261 = vunpack.c.h.b16 %v1849
  %v2262 = vunpack.c.l.b16 %v1850
  %v2263 = vunpack.c.h.b16 %v1850
  %v2264 = vunpack.c.l.b16 %v1851
  %v2265 = vunpack.c.h.b16 %v1851
  %v2266 = vunpack.c.l.b16 %v1852
  %v2267 = vunpack.c.h.b16 %v1852
  %v2268 = vunpack.c.l.b16 %v1853
  %v2269 = vunpack.c.h.b16 %v1853
  %v2270 = vunpack.c.l.b16 %v1854
  %v2271 = vunpack.c.h.b16 %v1854
  %v2272 = vunpack.c.l.b16 %v1855
  %v2273 = vunpack.c.h.b16 %v1855
  %v2274 = vunpack.c.l.b16 %v1856
  %v2275 = vunpack.c.h.b16 %v1856
  %v2276 = vunpack.c.l.b16 %v1857
  %v2277 = vunpack.c.h.b16 %v1857
  %v2278 = vunpack.c.l.b16 %v1858
  %v2279 = vunpack.c.h.b16 %v1858
  %v2280 = vunpack.c.l.b16 %v1859
  %v2281 = vunpack.c.h.b16 %v1859
  %v2282 = vunpack.c.l.b16 %v1860
  %v2283 = vunpack.c.h.b16 %v1860
  %v2284 = vunpack.c.l.b16 %v1861
  %v2285 = vunpack.c.h.b16 %v1861
  %v2286 = vunpack.c.l.b16 %v1862
  %v2287 = vunpack.c.h.b16 %v1862
  %v2288 = vunpack.c.l.b16 %v1863
  %v2289 = vunpack.c.h.b16 %v1863
  %v2290 = vunpack.c.l.b16 %v1864
  %v2291 = vunpack.c.h.b16 %v1864
  %v2292 = vunpack.c.l.b16 %v1865
  %v2293 = vunpack.c.h.b16 %v1865
  %v2294 = vunpack.c.l.b16 %v1866
  %v2295 = vunpack.c.h.b16 %v1866
  %v2296 = vunpack.c.l.b16 %v1867
  %v2297 = vunpack.c.h.b16 %v1867
  %v2298 = vunpack.c.l.b16 %v1868
  %v2299 = vunpack.c.h.b16 %v1868
  %v2300 = vunpack.c.l.b16 %v1869
  %v2301 = vunpack.c.h.b16 %v1869
  %v2302 = vunpack.c.l.b16 %v1870
  %v2303 = vunpack.c.h.b16 %v1870
  %v2304 = vunpack.c.l.b16 %v1871
  %v2305 = vunpack.c.h.b16 %v1871
  %v2306 = vunpack.c.l.b16 %v1872
  %v2307 = vunpack.c.h.b16 %v1872
  %v2308 = vunpack.c.l.b16 %v1873
  %v2309 = vunpack.c.h.b16 %v1873
  %v2310 = vunpack.c.l.b16 %v1874
  %v2311 = vunpack.c.h.b16 %v1874
  %v2312 = vunpack.c.l.b16 %v1875
  %v2313 = vunpack.c.h.b16 %v1875
  %v2314 = vunpack.c.l.b16 %v1876
  %v2315 = vunpack.c.h.b16 %v1876
  %v2316 = vunpack.c.l.b16 %v1877
  %v2317 = vunpack.c.h.b16 %v1877
  %v2318 = vunpack.c.l.b16 %v1878
  %v2319 = vunpack.c.h.b16 %v1878
  %v2320 = vunpack.c.l.b16 %v1879
  %v2321 = vunpack.c.h.b16 %v1879
  %v2322 = vunpack.c.l.b16 %v1880
  %v2323 = vunpack.c.h.b16 %v1880
  %v2324 = vunpack.c.l.b16 %v1881
  %v2325 = vunpack.c.h.b16 %v1881
  %v2326 = vpack.c.b16 %v2040, %v2038
  %v2327 = vpack.c.b16 %v2041, %v2039
  %v2328 = vpack.c.b16 %v2044, %v2042
  %v2329 = vpack.c.b16 %v2045, %v2043
  %v2330 = vpack.c.b16 %v2048, %v2046
  %v2331 = vpack.c.b16 %v2049, %v2047
  %v2332 = vpack.c.b16 %v2052, %v2050
  %v2333 = vpack.c.b16 %v2053, %v2051
  %v2334 = vpack.c.b16 %v2056, %v2054
  %v2335 = vpack.c.b16 %v2057, %v2055
  %v2336 = vpack.c.b16 %v2060, %v2058
  %v2337 = vpack.c.b16 %v2061, %v2059
  %v2338 = vpack.c.b16 %v2064, %v2062
  %v2339 = vpack.c.b16 %v2065, %v2063
  %v2340 = vpack.c.b16 %v2068, %v2066
  %v2341 = vpack.c.b16 %v2069, %v2067
  %v2342 = vpack.c.b16 %v2072, %v2070
  %v2343 = vpack.c.b16 %v2073, %v2071
  %v2344 = vpack.c.b16 %v2076, %v2074
  %v2345 = vpack.c.b16 %v2077, %v2075
  %v2346 = vpack.c.b16 %v2080, %v2078
  %v2347 = vpack.c.b16 %v2081, %v2079
  %v2348 = vpack.c.b16 %v2084, %v2082
  %v2349 = vpack.c.b16 %v2085, %v2083
  %v2350 = vpack.c.b16 %v2088, %v2086
  %v2351 = vpack.c.b16 %v2089, %v2087
  %v2352 = vpack.c.b16 %v2092, %v2090
  %v2353 = vpack.c.b16 %v2093, %v2091
  %v2354 = vpack.c.b16 %v2096, %v2094
  %v2355 = vpack.c.b16 %v2097, %v2095
  %v2356 = vpack.c.b16 %v2100, %v2098
  %v2357 = vpack.c.b16 %v2101, %v2099
  %v2358 = vpack.c.b16 %v2104, %v2102
  %v2359 = vpack.c.b16 %v2105, %v2103
  %v2360 = vpack.c.b16 %v2108, %v2106
  %v2361 = vpack.c.b16 %v2109, %v2107
  %v2362 = vpack.c.b16 %v2112, %v2110
  %v2363 = vpack.c.b16 %v2113, %v2111
  %v2364 = vpack.c.b16 %v2116, %v2114
  %v2365 = vpack.c.b16 %v2117, %v2115
  %v2366 = vpack.c.b16 %v2120, %v2118
  %v2367 = vpack.c.b16 %v2121, %v2119
  %v2368 = vpack.c.b16 %v2124, %v2122
  %v2369 = vpack.c.b16 %v2125, %v2123
  %v2370 = vpack.c.b16 %v2128, %v2126
  %v2371 = vpack.c.b16 %v2129, %v2127
  %v2372 = vpack.c.b16 %v2132, %v2130
  %v2373 = vpack.c.b16 %v2133, %v2131
  %v2374 = vpack.c.b16 %v2136, %v2134
  %v2375 = vpack.c.b16 %v2137, %v2135
  %v2376 = vpack.c.b16 %v2140, %v2138
  %v2377 = vpack.c.b16 %v2141, %v2139
  %v2378 = vpack.c.b16 %v2144, %v2142
  %v2379 = vpack.c.b16 %v2145, %v2143
  %v2380 = vpack.c.b16 %v2148, %v2146
  %v2381 = vpack.c.b16 %v2149, %v2147
  %v2382 = vpack.c.b16 %v2152, %v2150
  %v2383 = vpack.c.b16 %v2153, %v2151
  %v2384 = vpack.c.b16 %v2156, %v2154
  %v2385 = vpack.c.b16 %v2157, %v2155
  %v2386 = vpack.c.b16 %v2160, %v2158
  %v2387 = vpack.c.b16 %v2161, %v2159
  %v2388 = vpack.c.b16 %v2164, %v2162
  %v2389 = vpack.c.b16 %v2165, %v2163
  %v2390 = vpack.c.b16 %v2168, %v2166
  %v2391 = vpack.c.b16 %v2169, %v2167
  %v2392 = vpack.c.b16 %v2172, %v2170
  %v2393 = vpack.c.b16 %v2173, %v2171
  %v2394 = vpack.c.b16 %v2176, %v2174
  %v2395 = vpack.c.b16 %v2177, %v2175
  %v2396 = vpack.c.b16 %v2180, %v2178
  %v2397 = vpack.c.b16 %v2181, %v2179
  %v2398 = vpack.c.b16 %v2184, %v2182
  %v2399 = vpack.c.b16 %v2185, %v2183
  %v2400 = vpack.c.b16 %v2188, %v2186
  %v2401 = vpack.c.b16 %v2189, %v2187
  %v2402 = vpack.c.b16 %v2192, %v2190
  %v2403 = vpack.c.b16 %v2193, %v2191
  %v2404 = vpack.c.b16 %v2196, %v2194
  %v2405 = vpack.c.b16 %v2197, %v2195
  %v2406 = vpack.c.b16 %v2200, %v2198
  %v2407 = vpack.c.b16 %v2201, %v2199
  %v2408 = vpack.c.b16 %v2204, %v2202
  %v2409 = vpack.c.b16 %v2205, %v2203
  %v2410 = vpack.c.b16 %v2208, %v2206
  %v2411 = vpack.c.b16 %v2209, %v2207
  %v2412 = vpack.c.b16 %v2212, %v2210
  %v2413 = vpack.c.b16 %v2213, %v2211
  %v2414 = vpack.c.b16 %v2216, %v2214
  %v2415 = vpack.c.b16 %v2217, %v2215
  %v2416 = vpack.c.b16 %v2220, %v2218
  %v2417 = vpack.c.b16 %v2221, %v2219
  %v2418 = vpack.c.b16 %v2224, %v2222
  %v2419 = vpack.c.b16 %v2225, %v2223
  %v2420 = vpack.c.b16 %v2228, %v2226
  %v2421 = vpack.c.b16 %v2229, %v2227
  %v2422 = vpack.c.b16 %v2232, %v2230
  %v2423 = vpack.c.b16 %v2233, %v2231
  %v2424 = vpack.c.b16 %v2236, %v2234
  %v2425 = vpack.c.b16 %v2237, %v2235
  %v2426 = vpack.c.b16 %v2240, %v2238
  %v2427 = vpack.c.b16 %v2241, %v2239
  %v2428 = vpack.c.b16 %v2244, %v2242
  %v2429 = vpack.c.b16 %v2245, %v2243
  %v2430 = vpack.c.b16 %v2248, %v2246
  %v2431 = vpack.c.b16 %v2249, %v2247
  %v2432 = vpack.c.b16 %v2252, %v2250
  %v2433 = vpack.c.b16 %v2253, %v2251
  %v2434 = vpack.c.b16 %v2256, %v2254
  %v2435 = vpack.c.b16 %v2257, %v2255
  %v2436 = vpack.c.b16 %v2260, %v2258
  %v2437 = vpack.c.b16 %v2261, %v2259
  %v2438 = vpack.c.b16 %v2264, %v2262
  %v2439 = vpack.c.b16 %v2265, %v2263
  %v2440 = vpack.c.b16 %v2268, %v2266
  %v2441 = vpack.c.b16 %v2269, %v2267
  %v2442 = vpack.c.b16 %v2272, %v2270
  %v2443 = vpack.c.b16 %v2273, %v2271
  %v2444 = vpack.c.b16 %v2276, %v2274
  %v2445 = vpack.c.b16 %v2277, %v2275
  %v2446 = vpack.c.b16 %v2280, %v2278
  %v2447 = vpack.c.b16 %v2281, %v2279
  %v2448 = vpack.c.b16 %v2284, %v2282
  %v2449 = vpack.c.b16 %v2285, %v2283
  %v2450 = vpack.c.b16 %v2288, %v2286
  %v2451 = vpack.c.b16 %v2289, %v2287
  %v2452 = vpack.c.b16 %v2292, %v2290
  %v2453 = vpack.c.b16 %v2293, %v2291
  %v2454 = vpack.c.b16 %v2296, %v2294
  %v2455 = vpack.c.b16 %v2297, %v2295
  %v2456 = vpack.c.b16 %v2300, %v2298
  %v2457 = vpack.c.b16 %v2301, %v2299
  %v2458 = vpack.c.b16 %v2304, %v2302
  %v2459 = vpack.c.b16 %v2305, %v2303
  %v2460 = vpack.c.b16 %v2308, %v2306
  %v2461 = vpack.c.b16 %v2309, %v2307
  %v2462 = vpack.c.b16 %v2312, %v2310
  %v2463 = vpack.c.b16 %v2313, %v2311
  %v2464 = vpack.c.b16 %v2316, %v2314
  %v2465 = vpack.c.b16 %v2317, %v2315
  %v2466 = vpack.c.b16 %v2320, %v2318
  %v2467 = vpack.c.b16 %v2321, %v2319
  %v2468 = vpack.c.b16 %v2324, %v2322
  %v2469 = vpack.c.b16 %v2325, %v2323
  %2614 = vmatprep.subr.bf16.mxu0 %v2341
  %2615 = vmatpush1.bf16.msra.mxu0 %v2340
  %2616 = vmatprep.subr.bf16.mxu0 %v2339
  %2617 = vmatpush1.bf16.msra.mxu0 %v2338
  %2618 = vmatprep.subr.bf16.mxu0 %v2337
  %2619 = vmatpush1.bf16.msra.mxu0 %v2336
  %2620 = vmatprep.subr.bf16.mxu0 %v2335
  %2621 = vmatpush1.bf16.msra.mxu0 %v2334
  %2622 = vmatprep.subr.bf16.mxu0 %v2333
  %2623 = vmatpush1.bf16.msra.mxu0 %v2332
  %2624 = vmatprep.subr.bf16.mxu0 %v2331
  %2625 = vmatpush1.bf16.msra.mxu0 %v2330
  %2626 = vmatprep.subr.bf16.mxu0 %v2329
  %2627 = vmatpush1.bf16.msra.mxu0 %v2328
  %2628 = vmatprep.subr.bf16.mxu0 %v2327
  %2629 = vmatpush1.bf16.msra.mxu0 %v2326
  %2630 = vmatprep.subr.bf16.mxu0 %v2357
  %2631 = vmatpush2.bf16.msra.mxu0 %v2356
  %2632 = vmatprep.subr.bf16.mxu0 %v2355
  %2633 = vmatpush2.bf16.msra.mxu0 %v2354
  %2634 = vmatprep.subr.bf16.mxu0 %v2353
  %2635 = vmatpush2.bf16.msra.mxu0 %v2352
  %2636 = vmatprep.subr.bf16.mxu0 %v2351
  %2637 = vmatpush2.bf16.msra.mxu0 %v2350
  %2638 = vmatprep.subr.bf16.mxu0 %v2349
  %2639 = vmatpush2.bf16.msra.mxu0 %v2348
  %2640 = vmatprep.subr.bf16.mxu0 %v2347
  %2641 = vmatpush2.bf16.msra.mxu0 %v2346
  %2642 = vmatprep.subr.bf16.mxu0 %v2345
  %2643 = vmatpush2.bf16.msra.mxu0 %v2344
  %2644 = vmatprep.subr.bf16.mxu0 %v2343
  %2645 = vmatpush2.bf16.msra.mxu0 %v2342
  %2646 = vmatprep.mubr.bf16.mxu0 %v1730
  %2647 = vmatmul.mubr.bf16.gmra.mxu0 %v1729
  %v2648 = vpop.f32.mrf.mxu0
  %v2649 = vadd.f32 %v1887, %v2648
  %v2650 = vpop.f32.mrf.mxu0
  %v2651 = vadd.f32 %v1891, %v2650
  %v2652 = vpop.f32.mrf.mxu0
  %v2653 = vpop.f32.mrf.mxu0
  %2654 = vdwg.mxu0
  %2655 = vmatprep.subr.bf16.mxu0 %v2373
  %2656 = vmatpush1.bf16.msra.mxu0 %v2372
  %2657 = vmatprep.subr.bf16.mxu0 %v2371
  %2658 = vmatpush1.bf16.msra.mxu0 %v2370
  %2659 = vmatprep.subr.bf16.mxu0 %v2369
  %2660 = vmatpush1.bf16.msra.mxu0 %v2368
  %2661 = vmatprep.subr.bf16.mxu0 %v2367
  %2662 = vmatpush1.bf16.msra.mxu0 %v2366
  %2663 = vmatprep.subr.bf16.mxu0 %v2365
  %2664 = vmatpush1.bf16.msra.mxu0 %v2364
  %2665 = vmatprep.subr.bf16.mxu0 %v2363
  %2666 = vmatpush1.bf16.msra.mxu0 %v2362
  %2667 = vmatprep.subr.bf16.mxu0 %v2361
  %2668 = vmatpush1.bf16.msra.mxu0 %v2360
  %2669 = vmatprep.subr.bf16.mxu0 %v2359
  %2670 = vmatpush1.bf16.msra.mxu0 %v2358
  %2671 = vmatprep.subr.bf16.mxu0 %v2389
  %2672 = vmatpush2.bf16.msra.mxu0 %v2388
  %2673 = vmatprep.subr.bf16.mxu0 %v2387
  %2674 = vmatpush2.bf16.msra.mxu0 %v2386
  %2675 = vmatprep.subr.bf16.mxu0 %v2385
  %2676 = vmatpush2.bf16.msra.mxu0 %v2384
  %2677 = vmatprep.subr.bf16.mxu0 %v2383
  %2678 = vmatpush2.bf16.msra.mxu0 %v2382
  %2679 = vmatprep.subr.bf16.mxu0 %v2381
  %2680 = vmatpush2.bf16.msra.mxu0 %v2380
  %2681 = vmatprep.subr.bf16.mxu0 %v2379
  %2682 = vmatpush2.bf16.msra.mxu0 %v2378
  %2683 = vmatprep.subr.bf16.mxu0 %v2377
  %2684 = vmatpush2.bf16.msra.mxu0 %v2376
  %2685 = vmatprep.subr.bf16.mxu0 %v2375
  %2686 = vmatpush2.bf16.msra.mxu0 %v2374
  %2687 = vmatprep.mubr.bf16.mxu0 %v1732
  %2688 = vmatmul.mubr.bf16.gmra.mxu0 %v1731
  %v2689 = vpop.f32.mrf.mxu0
  %v2690 = vadd.f32 %v2649, %v2689
  %v2691 = vpop.f32.mrf.mxu0
  %v2692 = vadd.f32 %v2651, %v2691
  %v2693 = vpop.f32.mrf.mxu0
  %v2694 = vpop.f32.mrf.mxu0
  %2695 = vdwg.mxu0
  %2696 = vmatprep.subr.bf16.mxu0 %v2405
  %2697 = vmatpush1.bf16.msra.mxu0 %v2404
  %2698 = vmatprep.subr.bf16.mxu0 %v2403
  %2699 = vmatpush1.bf16.msra.mxu0 %v2402
  %2700 = vmatprep.subr.bf16.mxu0 %v2401
  %2701 = vmatpush1.bf16.msra.mxu0 %v2400
  %2702 = vmatprep.subr.bf16.mxu0 %v2399
  %2703 = vmatpush1.bf16.msra.mxu0 %v2398
  %2704 = vmatprep.subr.bf16.mxu0 %v2397
  %2705 = vmatpush1.bf16.msra.mxu0 %v2396
  %2706 = vmatprep.subr.bf16.mxu0 %v2395
  %2707 = vmatpush1.bf16.msra.mxu0 %v2394
  %2708 = vmatprep.subr.bf16.mxu0 %v2393
  %2709 = vmatpush1.bf16.msra.mxu0 %v2392
  %2710 = vmatprep.subr.bf16.mxu0 %v2391
  %2711 = vmatpush1.bf16.msra.mxu0 %v2390
  %2712 = vmatprep.subr.bf16.mxu0 %v2421
  %2713 = vmatpush2.bf16.msra.mxu0 %v2420
  %2714 = vmatprep.subr.bf16.mxu0 %v2419
  %2715 = vmatpush2.bf16.msra.mxu0 %v2418
  %2716 = vmatprep.subr.bf16.mxu0 %v2417
  %2717 = vmatpush2.bf16.msra.mxu0 %v2416
  %2718 = vmatprep.subr.bf16.mxu0 %v2415
  %2719 = vmatpush2.bf16.msra.mxu0 %v2414
  %2720 = vmatprep.subr.bf16.mxu0 %v2413
  %2721 = vmatpush2.bf16.msra.mxu0 %v2412
  %2722 = vmatprep.subr.bf16.mxu0 %v2411
  %2723 = vmatpush2.bf16.msra.mxu0 %v2410
  %2724 = vmatprep.subr.bf16.mxu0 %v2409
  %2725 = vmatpush2.bf16.msra.mxu0 %v2408
  %2726 = vmatprep.subr.bf16.mxu0 %v2407
  %2727 = vmatpush2.bf16.msra.mxu0 %v2406
  %2728 = vmatprep.mubr.bf16.mxu0 %v1734
  %2729 = vmatmul.mubr.bf16.gmra.mxu0 %v1733
  %v2730 = vpop.f32.mrf.mxu0
  %v2731 = vadd.f32 %v2690, %v2730
  %v2732 = vpop.f32.mrf.mxu0
  %v2733 = vadd.f32 %v2692, %v2732
  %v2734 = vpop.f32.mrf.mxu0
  %v2735 = vpop.f32.mrf.mxu0
  %2736 = vdwg.mxu0
  %2737 = vmatprep.subr.bf16.mxu0 %v2437
  %2738 = vmatpush1.bf16.msra.mxu0 %v2436
  %2739 = vmatprep.subr.bf16.mxu0 %v2435
  %2740 = vmatpush1.bf16.msra.mxu0 %v2434
  %2741 = vmatprep.subr.bf16.mxu0 %v2433
  %2742 = vmatpush1.bf16.msra.mxu0 %v2432
  %2743 = vmatprep.subr.bf16.mxu0 %v2431
  %2744 = vmatpush1.bf16.msra.mxu0 %v2430
  %2745 = vmatprep.subr.bf16.mxu0 %v2429
  %2746 = vmatpush1.bf16.msra.mxu0 %v2428
  %2747 = vmatprep.subr.bf16.mxu0 %v2427
  %2748 = vmatpush1.bf16.msra.mxu0 %v2426
  %2749 = vmatprep.subr.bf16.mxu0 %v2425
  %2750 = vmatpush1.bf16.msra.mxu0 %v2424
  %2751 = vmatprep.subr.bf16.mxu0 %v2423
  %2752 = vmatpush1.bf16.msra.mxu0 %v2422
  %2753 = vmatprep.subr.bf16.mxu0 %v2453
  %2754 = vmatpush2.bf16.msra.mxu0 %v2452
  %2755 = vmatprep.subr.bf16.mxu0 %v2451
  %2756 = vmatpush2.bf16.msra.mxu0 %v2450
  %2757 = vmatprep.subr.bf16.mxu0 %v2449
  %2758 = vmatpush2.bf16.msra.mxu0 %v2448
  %2759 = vmatprep.subr.bf16.mxu0 %v2447
  %2760 = vmatpush2.bf16.msra.mxu0 %v2446
  %2761 = vmatprep.subr.bf16.mxu0 %v2445
  %2762 = vmatpush2.bf16.msra.mxu0 %v2444
  %2763 = vmatprep.subr.bf16.mxu0 %v2443
  %2764 = vmatpush2.bf16.msra.mxu0 %v2442
  %2765 = vmatprep.subr.bf16.mxu0 %v2441
  %2766 = vmatpush2.bf16.msra.mxu0 %v2440
  %2767 = vmatprep.subr.bf16.mxu0 %v2439
  %2768 = vmatpush2.bf16.msra.mxu0 %v2438
  %2769 = vmatprep.mubr.bf16.mxu0 %v1736
  %2770 = vmatmul.mubr.bf16.gmra.mxu0 %v1735
  %v2771 = vpop.f32.mrf.mxu0
  %v2772 = vadd.f32 %v2731, %v2771
  %v2773 = vpop.f32.mrf.mxu0
  %v2774 = vadd.f32 %v2733, %v2773
  %v2775 = vpop.f32.mrf.mxu0
  %v2776 = vpop.f32.mrf.mxu0
  %2777 = vdwg.mxu0
  %2778 = vmatprep.subr.bf16.mxu0 %v2469
  %2779 = vmatpush1.bf16.msra.mxu0 %v2468
  %2780 = vmatprep.subr.bf16.mxu0 %v2467
  %2781 = vmatpush1.bf16.msra.mxu0 %v2466
  %2782 = vmatprep.subr.bf16.mxu0 %v2465
  %2783 = vmatpush1.bf16.msra.mxu0 %v2464
  %2784 = vmatprep.subr.bf16.mxu0 %v2463
  %2785 = vmatpush1.bf16.msra.mxu0 %v2462
  %2786 = vmatprep.subr.bf16.mxu0 %v2461
  %2787 = vmatpush1.bf16.msra.mxu0 %v2460
  %2788 = vmatprep.subr.bf16.mxu0 %v2459
  %2789 = vmatpush1.bf16.msra.mxu0 %v2458
  %2790 = vmatprep.subr.bf16.mxu0 %v2457
  %2791 = vmatpush1.bf16.msra.mxu0 %v2456
  %2792 = vmatprep.subr.bf16.mxu0 %v2455
  %2793 = vmatpush1.bf16.msra.mxu0 %v2454
  %2794 = vmatprep.subr.bf16.mxu0 0
  %2795 = vmatpush2.bf16.msra.mxu0 0
  %2796 = vmatprep.subr.bf16.mxu0 0
  %2797 = vmatpush2.bf16.msra.mxu0 0
  %2798 = vmatprep.subr.bf16.mxu0 0
  %2799 = vmatpush2.bf16.msra.mxu0 0
  %2800 = vmatprep.subr.bf16.mxu0 0
  %2801 = vmatpush2.bf16.msra.mxu0 0
  %2802 = vmatprep.subr.bf16.mxu0 0
  %2803 = vmatpush2.bf16.msra.mxu0 0
  %2804 = vmatprep.subr.bf16.mxu0 0
  %2805 = vmatpush2.bf16.msra.mxu0 0
  %2806 = vmatprep.subr.bf16.mxu0 0
  %2807 = vmatpush2.bf16.msra.mxu0 0
  %2808 = vmatprep.subr.bf16.mxu0 0
  %2809 = vmatpush2.bf16.msra.mxu0 0
  %2810 = vmatprep.mubr.bf16.mxu0 0
  %2811 = vmatmul.mubr.bf16.gmra.mxu0 %v1737
  %v2812 = vpop.f32.mrf.mxu0
  %v2813 = vadd.f32 %v2772, %v2812
  %v2814 = vpop.f32.mrf.mxu0
  %v2815 = vadd.f32 %v2774, %v2814
  %v2816 = vpop.f32.mrf.mxu0
  %v2817 = vpop.f32.mrf.mxu0
  %2818 = vdwg.mxu0
  %v2819 = vmax.f32 %v2813, 0.0
  %v2820 = vmax.f32 %v2815, 0.0
  %v2821 = vpack.c.bf16 %v2819, %v2819
  %v2822 = vpack.c.bf16 %v2820, %v2820
  %v2823 = vld [vmem:[%s5] sm:$0xf]
  %v2824 = vld [vmem:[%s5 + $0x4] sm:$0xf]
  %v2825 = vld [vmem:[%s5 + $0x8] sm:$0xf]
  %v2826 = vld [vmem:[%s5 + $0xc] sm:$0xf]
  %v2827 = vld [vmem:[%s5 + $0x10] sm:$0xf]
  %v2828 = vld [vmem:[%s5 + $0x14] sm:$0xf]
  %v2829 = vld [vmem:[%s5 + $0x18] sm:$0xf]
  %v2830 = vld [vmem:[%s5 + $0x1c] sm:$0xf]
  %v2831 = vld [vmem:[%s5 + $0x20] sm:$0xf]
  %v2832 = vld [vmem:[%s5 + $0x24] sm:$0xf]
  %v2833 = vld [vmem:[%s5 + $0x28] sm:$0xf]
  %v2834 = vld [vmem:[%s5 + $0x2c] sm:$0xf]
  %v2835 = vld [vmem:[%s5 + $0x30] sm:$0xf]
  %v2836 = vld [vmem:[%s5 + $0x34] sm:$0xf]
  %v2837 = vld [vmem:[%s5 + $0x38] sm:$0xf]
  %v2838 = vld [vmem:[%s5 + $0x3c] sm:$0xf]
  %v2839 = vld [vmem:[%s5 + $0x40] sm:$0xf]
  %v2840 = vld [vmem:[%s5 + $0x44] sm:$0xf]
  %v2841 = vld [vmem:[%s5 + $0x48] sm:$0xf]
  %v2842 = vld [vmem:[%s5 + $0x4c] sm:$0xf]
  %v2843 = vld [vmem:[%s5 + $0x50] sm:$0xf]
  %v2844 = vld [vmem:[%s5 + $0x54] sm:$0xf]
  %v2845 = vld [vmem:[%s5 + $0x58] sm:$0xf]
  %v2846 = vld [vmem:[%s5 + $0x5c] sm:$0xf]
  %v2847 = vld [vmem:[%s5 + $0x60] sm:$0xf]
  %v2848 = vld [vmem:[%s5 + $0x64] sm:$0xf]
  %v2849 = vld [vmem:[%s5 + $0x68] sm:$0xf]
  %v2850 = vld [vmem:[%s5 + $0x6c] sm:$0xf]
  %v2851 = vld [vmem:[%s5 + $0x70] sm:$0xf]
  %v2852 = vld [vmem:[%s5 + $0x74] sm:$0xf]
  %v2853 = vld [vmem:[%s5 + $0x78] sm:$0xf]
  %v2854 = vld [vmem:[%s5 + $0x7c] sm:$0xf]
  %v2855 = vld [vmem:[%s6] sm:$0x1]
  %v2857 = vlaneseq
  %v2858 = vshrl.u32 %v2857, 7
  %v2859 = vsub.s32 0, %v2858
  %v2860 = vrot.slane %v2855, %v2859
  %v2894 = vunpack.c.l.b16 %v2823
  %v2895 = vunpack.c.l.b16 %v2824
  %v2896 = vunpack.c.l.b16 %v2825
  %v2897 = vunpack.c.l.b16 %v2826
  %v2898 = vunpack.c.l.b16 %v2827
  %v2899 = vunpack.c.l.b16 %v2828
  %v2900 = vunpack.c.l.b16 %v2829
  %v2901 = vunpack.c.l.b16 %v2830
  %v2902 = vunpack.c.l.b16 %v2831
  %v2903 = vunpack.c.l.b16 %v2832
  %v2904 = vunpack.c.l.b16 %v2833
  %v2905 = vunpack.c.l.b16 %v2834
  %v2906 = vunpack.c.l.b16 %v2835
  %v2907 = vunpack.c.l.b16 %v2836
  %v2908 = vunpack.c.l.b16 %v2837
  %v2909 = vunpack.c.l.b16 %v2838
  %v2910 = vunpack.c.l.b16 %v2839
  %v2911 = vunpack.c.l.b16 %v2840
  %v2912 = vunpack.c.l.b16 %v2841
  %v2913 = vunpack.c.l.b16 %v2842
  %v2914 = vunpack.c.l.b16 %v2843
  %v2915 = vunpack.c.l.b16 %v2844
  %v2916 = vunpack.c.l.b16 %v2845
  %v2917 = vunpack.c.l.b16 %v2846
  %v2918 = vunpack.c.l.b16 %v2847
  %v2919 = vunpack.c.l.b16 %v2848
  %v2920 = vunpack.c.l.b16 %v2849
  %v2921 = vunpack.c.l.b16 %v2850
  %v2922 = vunpack.c.l.b16 %v2851
  %v2923 = vunpack.c.l.b16 %v2852
  %v2924 = vunpack.c.l.b16 %v2853
  %v2925 = vunpack.c.l.b16 %v2854
  %v2926 = vpack.c.b16 %v2895, %v2894
  %v2927 = vpack.c.b16 %v2897, %v2896
  %v2928 = vpack.c.b16 %v2899, %v2898
  %v2929 = vpack.c.b16 %v2901, %v2900
  %v2930 = vpack.c.b16 %v2903, %v2902
  %v2931 = vpack.c.b16 %v2905, %v2904
  %v2932 = vpack.c.b16 %v2907, %v2906
  %v2933 = vpack.c.b16 %v2909, %v2908
  %v2934 = vpack.c.b16 %v2911, %v2910
  %v2935 = vpack.c.b16 %v2913, %v2912
  %v2936 = vpack.c.b16 %v2915, %v2914
  %v2937 = vpack.c.b16 %v2917, %v2916
  %v2938 = vpack.c.b16 %v2919, %v2918
  %v2939 = vpack.c.b16 %v2921, %v2920
  %v2940 = vpack.c.b16 %v2923, %v2922
  %v2941 = vpack.c.b16 %v2925, %v2924
  %2958 = vmatprep.subr.bf16.mxu0 0
  %2959 = vmatpush1.bf16.msra.mxu0 %v2933
  %2960 = vmatprep.subr.bf16.mxu0 0
  %2961 = vmatpush1.bf16.msra.mxu0 %v2932
  %2962 = vmatprep.subr.bf16.mxu0 0
  %2963 = vmatpush1.bf16.msra.mxu0 %v2931
  %2964 = vmatprep.subr.bf16.mxu0 0
  %2965 = vmatpush1.bf16.msra.mxu0 %v2930
  %2966 = vmatprep.subr.bf16.mxu0 0
  %2967 = vmatpush1.bf16.msra.mxu0 %v2929
  %2968 = vmatprep.subr.bf16.mxu0 0
  %2969 = vmatpush1.bf16.msra.mxu0 %v2928
  %2970 = vmatprep.subr.bf16.mxu0 0
  %2971 = vmatpush1.bf16.msra.mxu0 %v2927
  %2972 = vmatprep.subr.bf16.mxu0 0
  %2973 = vmatpush1.bf16.msra.mxu0 %v2926
  %2974 = vmatprep.subr.bf16.mxu0 0
  %2975 = vmatpush2.bf16.msra.mxu0 %v2941
  %2976 = vmatprep.subr.bf16.mxu0 0
  %2977 = vmatpush2.bf16.msra.mxu0 %v2940
  %2978 = vmatprep.subr.bf16.mxu0 0
  %2979 = vmatpush2.bf16.msra.mxu0 %v2939
  %2980 = vmatprep.subr.bf16.mxu0 0
  %2981 = vmatpush2.bf16.msra.mxu0 %v2938
  %2982 = vmatprep.subr.bf16.mxu0 0
  %2983 = vmatpush2.bf16.msra.mxu0 %v2937
  %2984 = vmatprep.subr.bf16.mxu0 0
  %2985 = vmatpush2.bf16.msra.mxu0 %v2936
  %2986 = vmatprep.subr.bf16.mxu0 0
  %2987 = vmatpush2.bf16.msra.mxu0 %v2935
  %2988 = vmatprep.subr.bf16.mxu0 0
  %2989 = vmatpush2.bf16.msra.mxu0 %v2934
  %2990 = vmatprep.mubr.bf16.mxu0 %v2822
  %2991 = vmatmul.mubr.bf16.gmra.mxu0 %v2821
  %v2992 = vpop.f32.mrf.mxu0
  %v2993 = vadd.f32 %v2860, %v2992
  %v2994 = vpop.f32.mrf.mxu0
  %v2995 = vpop.f32.mrf.mxu0
  %v2996 = vpop.f32.mrf.mxu0
  %2997 = vdwg.mxu0
  %v2998 = vmax.f32 %v2993, 0.0
  %v2999 = vld [vmem:[%s7] sm:$0xff]
  %v3000 = vld [vmem:[%s7 + $0x8] sm:$0xff]
  %v3001 = vld [vmem:[%s7 + $0x10] sm:$0xff]
  %v3002 = vld [vmem:[%s7 + $0x18] sm:$0xff]
  %v3003 = vld [vmem:[%s7 + $0x20] sm:$0xff]
  %v3004 = vld [vmem:[%s7 + $0x28] sm:$0xff]
  %v3005 = vld [vmem:[%s7 + $0x30] sm:$0xff]
  %v3006 = vld [vmem:[%s7 + $0x38] sm:$0xff]
  %v3007 = vld [vmem:[%s7 + $0x40] sm:$0xff]
  %v3008 = vld [vmem:[%s7 + $0x48] sm:$0xff]
  %v3009 = vld [vmem:[%s7 + $0x50] sm:$0xff]
  %v3010 = vld [vmem:[%s7 + $0x58] sm:$0xff]
  %v3011 = vld [vmem:[%s7 + $0x60] sm:$0xff]
  %v3012 = vld [vmem:[%s7 + $0x68] sm:$0xff]
  %v3013 = vld [vmem:[%s7 + $0x70] sm:$0xff]
  %v3014 = vld [vmem:[%s7 + $0x78] sm:$0xff]
  %v3015 = vld [vmem:[%s8] sm:$0x1]
  %v3017 = vlaneseq
  %v3018 = vshrl.u32 %v3017, 7
  %v3019 = vsub.s32 0, %v3018
  %v3020 = vrot.slane %v3015, %v3019
  %3022 = vmatprep.subr.mxu0 0.0
  %3023 = vmatpush1.msra.mxu0 %v3014
  %3024 = vmatprep.subr.mxu0 0.0
  %3025 = vmatpush1.msra.mxu0 %v3013
  %3026 = vmatprep.subr.mxu0 0.0
  %3027 = vmatpush1.msra.mxu0 %v3012
  %3028 = vmatprep.subr.mxu0 0.0
  %3029 = vmatpush1.msra.mxu0 %v3011
  %3030 = vmatprep.subr.mxu0 0.0
  %3031 = vmatpush1.msra.mxu0 %v3010
  %3032 = vmatprep.subr.mxu0 0.0
  %3033 = vmatpush1.msra.mxu0 %v3009
  %3034 = vmatprep.subr.mxu0 0.0
  %3035 = vmatpush1.msra.mxu0 %v3008
  %3036 = vmatprep.subr.mxu0 0.0
  %3037 = vmatpush1.msra.mxu0 %v3007
  %3038 = vmatprep.subr.mxu0 0.0
  %3039 = vmatpush1.msra.mxu0 %v3006
  %3040 = vmatprep.subr.mxu0 0.0
  %3041 = vmatpush1.msra.mxu0 %v3005
  %3042 = vmatprep.subr.mxu0 0.0
  %3043 = vmatpush1.msra.mxu0 %v3004
  %3044 = vmatprep.subr.mxu0 0.0
  %3045 = vmatpush1.msra.mxu0 %v3003
  %3046 = vmatprep.subr.mxu0 0.0
  %3047 = vmatpush1.msra.mxu0 %v3002
  %3048 = vmatprep.subr.mxu0 0.0
  %3049 = vmatpush1.msra.mxu0 %v3001
  %3050 = vmatprep.subr.mxu0 0.0
  %3051 = vmatpush1.msra.mxu0 %v3000
  %3052 = vmatprep.subr.mxu0 0.0
  %3053 = vmatpush1.msra.mxu0 %v2999
  %3054 = vmatprep.subr.mxu0 0.0
  %3055 = vmatpush2.msra.mxu0 0.0
  %3056 = vmatprep.subr.mxu0 0.0
  %3057 = vmatpush2.msra.mxu0 0.0
  %3058 = vmatprep.subr.mxu0 0.0
  %3059 = vmatpush2.msra.mxu0 0.0
  %3060 = vmatprep.subr.mxu0 0.0
  %3061 = vmatpush2.msra.mxu0 0.0
  %3062 = vmatprep.subr.mxu0 0.0
  %3063 = vmatpush2.msra.mxu0 0.0
  %3064 = vmatprep.subr.mxu0 0.0
  %3065 = vmatpush2.msra.mxu0 0.0
  %3066 = vmatprep.subr.mxu0 0.0
  %3067 = vmatpush2.msra.mxu0 0.0
  %3068 = vmatprep.subr.mxu0 0.0
  %3069 = vmatpush2.msra.mxu0 0.0
  %3070 = vmatprep.subr.mxu0 0.0
  %3071 = vmatpush2.msra.mxu0 0.0
  %3072 = vmatprep.subr.mxu0 0.0
  %3073 = vmatpush2.msra.mxu0 0.0
  %3074 = vmatprep.subr.mxu0 0.0
  %3075 = vmatpush2.msra.mxu0 0.0
  %3076 = vmatprep.subr.mxu0 0.0
  %3077 = vmatpush2.msra.mxu0 0.0
  %3078 = vmatprep.subr.mxu0 0.0
  %3079 = vmatpush2.msra.mxu0 0.0
  %3080 = vmatprep.subr.mxu0 0.0
  %3081 = vmatpush2.msra.mxu0 0.0
  %3082 = vmatprep.subr.mxu0 0.0
  %3083 = vmatpush2.msra.mxu0 0.0
  %3084 = vmatprep.subr.mxu0 0.0
  %3085 = vmatpush2.msra.mxu0 0.0
  %3086 = vmatprep.mubr.f32.mxu0 0.0
  %3087 = vmatmul.mubr.f32.gmra.mxu0 %v2998
  %v3088 = vpop.f32.mrf.mxu0
  %v3089 = vadd.f32 %v3020, %v3088
  %v3090 = vpop.f32.mrf.mxu0
  %3091 = vdwg.mxu0
  %3092 = vst [vmem:[%s9] sm:$0xff] %v3089
  // Predicated region
  $region38: #{simple_cnn_forward.1} parent=0 // pred_check
    _
  $region39: #{simple_cnn_forward.1} parent=0 // pred_check_branch
    %3094 = sbr.rel (0) target = $region41
  $region40: #{simple_cnn_forward.1} parent=0 // pred_region
    _
  $region41: #{simple_cnn_forward.1} parent=0 // pred_fallthru
    _
  // Predicated region
  $region42: #{simple_cnn_forward.1} parent=0 // pred_check
    _
  $region43: #{simple_cnn_forward.1} parent=0 // pred_check_branch
    %3096 = sbr.rel (0) target = $region45
  $region44: #{simple_cnn_forward.1} parent=0 // pred_region
    _
  $region45: #{simple_cnn_forward.1} parent=0 // pred_fallthru
    _

</llo_original>
